<compile_context>
chip_gen: v7x
topology: tpu7x:2x2x1
jax: 0.10.0
libtpu: 0.0.40
codegen_flags: <defaults>
</compile_context>

<pallas_src>
import functools
import math

import numpy as np

import jax
import jax.numpy as jnp
from jax.experimental import pallas as pl
from jax.experimental.pallas import tpu as pltpu


# ----------------------------- Pallas kernel -------------------------------

def _fused_attn_kernel(x_ref, wqkv_ref, bqkv_ref, wproj_ref, bproj_ref, o_ref,
                       *, num_heads, patch_size):
    """One tile of TP serialized patches, rows stored lane-dense as (TP*K, C).

    Computes  y = proj( attention( qkv(x) ) )  for every patch in the tile.
    The qk scale is pre-folded into the Q columns of wqkv/bqkv. Softmax is f32
    (upcast_attention / upcast_softmax) with deferred normalization.
    """
    rows, c = x_ref.shape                       # rows = TP * K, lane-dense C
    kk = patch_size
    tp = rows // kk
    h = num_heads
    d = c // h

    x = x_ref[...]                                                   # (rows, C)
    in_dtype = x.dtype

    # --- fused qkv linear (contraction over C, f32 accumulate) ---
    qkv = jnp.dot(x, wqkv_ref[...], preferred_element_type=jnp.float32)
    qkv = qkv + bqkv_ref[...]                                        # (rows, 3C) f32

    # --- stack heads on the batch dim (b = head * TP + p) ---
    # d=16 must become the lane dim of the attention matmuls, so per-head
    # lane extraction is inherent; done once here, all compute below is
    # head-batched (single einsums / single exp / single reductions).
    q = jnp.concatenate(
        [qkv[:, hd * d:(hd + 1) * d].reshape(tp, kk, d) for hd in range(h)],
        axis=0)                                                      # (h*TP,K,D) f32
    k = jnp.concatenate(
        [qkv[:, c + hd * d:c + (hd + 1) * d].reshape(tp, kk, d) for hd in range(h)],
        axis=0)
    v = jnp.concatenate(
        [qkv[:, 2 * c + hd * d:2 * c + (hd + 1) * d].reshape(tp, kk, d)
         for hd in range(h)],
        axis=0).astype(in_dtype)                                     # V in input dtype

    # --- per-(patch, head) attention, f32 scores / softmax ---
    s = jnp.einsum("bkd,bjd->bkj", q, k,
                   preferred_element_type=jnp.float32)               # (B,K,K) f32
    s = s - jnp.max(s, axis=-1, keepdims=True)
    p = jnp.exp(s)
    l = jnp.sum(p, axis=-1, keepdims=True)                           # (B,K,1)
    oh = jnp.einsum("bkj,bjd->bkd", p.astype(in_dtype), v,
                    preferred_element_type=jnp.float32)              # (B,K,D) f32
    oh = oh * pl.reciprocal(l, approx=True)   # deferred normalization on the EUP

    # --- reassemble (rows, C) and do ONE fused output projection ---
    oh = jnp.concatenate(
        [oh[hd * tp:(hd + 1) * tp].reshape(rows, d) for hd in range(h)],
        axis=-1)                                                     # (rows, C)
    y = jnp.dot(oh.astype(in_dtype), wproj_ref[...],
                preferred_element_type=jnp.float32) + bproj_ref[...]
    o_ref[...] = y.astype(o_ref.dtype)


def _choose_patch_tile(num_patches, patch_size, max_patches_per_step=32,
                       target_grid_steps=4):
    """Pick TP (patches per grid step).

    Constraints:
      * TP*K rows must be a multiple of 8 (sublane) -> TP multiple of `step`.
      * Keep the grid at >= target_grid_steps steps when possible so v7x's two
        TensorCores both get work and the x/out double buffers overlap DMA.
      * Cap TP at 32: every intermediate with a 16/32/48/96 minor dim is
        lane-padded to 128 in VMEM, so the true per-step footprint at TP=32,
        K=48, C=32 f32 is ~<16 MiB (fits the 32 MiB scoped limit on all gens).
    """
    step = 8 // math.gcd(patch_size, 8)          # TP must be a multiple of this
    tp_cap = max(1, -(-num_patches // target_grid_steps))   # cdiv
    tp = min(max_patches_per_step, tp_cap, max(num_patches, 1))
    tp = max(step, (tp // step) * step)
    return tp


def serialized_attention(feat, qkv_w, qkv_b, proj_w, proj_b,
                         order_pad, inverse_unpad, num_heads, patch_size,
                         max_patches_per_step=32):
    """SerializedAttention.forward (non-flash path). Returns the new feat (N, C)."""
    n, c = feat.shape
    assert c % num_heads == 0
    d = c // num_heads
    scale = d ** (-0.5)

    # Fold the qk scale into the Q columns of the qkv weight and bias (free).
    scale_vec = jnp.concatenate([jnp.full((c,), scale, qkv_w.dtype),
                                 jnp.ones((2 * c,), qkv_w.dtype)])
    qkv_w_s = qkv_w * scale_vec[None, :]
    qkv_b_s = (qkv_b * scale_vec).reshape(1, -1)

    npad = int(order_pad.shape[0])
    num_patches = npad // patch_size
    tp = _choose_patch_tile(num_patches, patch_size, max_patches_per_step)
    p_pad = pl.cdiv(num_patches, tp) * tp

    # Pad the INDEX array (cheap, int32) instead of concatenating a zero
    # feature slab: padded rows alias row 0 and are never read back through
    # inverse_unpad, so the single gather below emits the padded slab directly.
    order_pad = jnp.asarray(order_pad, jnp.int32)
    if p_pad != num_patches:
        extra = (p_pad - num_patches) * patch_size
        order_pad = jnp.concatenate([order_pad, jnp.zeros((extra,), jnp.int32)])

    # Gather point features into serialized+padded order (single XLA gather).
    # qkv(feat)[order] == qkv(feat[order]) since the linear is row-wise, so the
    # qkv projection itself happens inside the fused kernel.
    x = feat[order_pad]                                           # (p_pad*K, C)

    rows_per_step = tp * patch_size
    total_rows = p_pad * patch_size
    grid = (total_rows // rows_per_step,)

    out = pl.pallas_call(
        functools.partial(_fused_attn_kernel, num_heads=num_heads,
                          patch_size=patch_size),
        out_shape=jax.ShapeDtypeStruct((total_rows, c), feat.dtype),
        grid=grid,
        in_specs=[
            pl.BlockSpec((rows_per_step, c), lambda i: (i, 0)),   # x rows (lane-dense)
            pl.BlockSpec((c, 3 * c), lambda i: (0, 0)),           # qkv weight (scaled)
            pl.BlockSpec((1, 3 * c), lambda i: (0, 0)),           # qkv bias (scaled)
            pl.BlockSpec((c, c), lambda i: (0, 0)),               # proj weight
            pl.BlockSpec((1, c), lambda i: (0, 0)),               # proj bias
        ],
        out_specs=pl.BlockSpec((rows_per_step, c), lambda i: (i, 0)),
        compiler_params=pltpu.CompilerParams(
            dimension_semantics=("parallel",),
            vmem_limit_bytes=32 * 1024 * 1024),
    )(x, qkv_w_s, qkv_b_s, proj_w, proj_b.reshape(1, -1))

    # inverse serialization (single XLA gather); proj was already applied
    # inside the kernel and commutes with this row permutation.
    return out[inverse_unpad]                                     # (N, C)


# ----------------------------- host-side glue ------------------------------

def offset2bincount(offset):
    return np.diff(np.asarray(offset, np.int64), prepend=0)


def get_padding_and_inverse(offset, patch_size):
    """Faithful numpy port of SerializedAttention.get_padding_and_inverse."""
    offset = np.asarray(offset, dtype=np.int64)
    bincount = offset2bincount(offset)
    bincount_pad = (bincount + patch_size - 1) // patch_size * patch_size
    mask_pad = bincount > patch_size
    bincount_pad = np.where(mask_pad, bincount_pad, bincount)
    _offset = np.concatenate(([0], offset))
    _offset_pad = np.concatenate(([0], np.cumsum(bincount_pad)))
    pad = np.arange(_offset_pad[-1])
    unpad = np.arange(_offset[-1])
    for i in range(len(offset)):
        unpad[_offset[i]:_offset[i + 1]] += _offset_pad[i] - _offset[i]
        if bincount[i] != bincount_pad[i]:
            pad[_offset_pad[i + 1] - patch_size + bincount[i] % patch_size:
                _offset_pad[i + 1]] = \
                pad[_offset_pad[i + 1] - 2 * patch_size + bincount[i] % patch_size:
                    _offset_pad[i + 1] - patch_size]
        pad[_offset_pad[i]:_offset_pad[i + 1]] -= _offset_pad[i] - _offset[i]
    return pad, unpad


# ----------------------------- pure-JAX reference --------------------------

def reference_serialized_attention(feat, qkv_w, qkv_b, proj_w, proj_b,
                                   order_pad, inverse_unpad, num_heads, patch_size):
    """Literal port of the torch non-flash math path (for correctness check)."""
    n, c = feat.shape
    h = num_heads
    d = c // h
    scale = d ** (-0.5)
    qkv = feat @ qkv_w + qkv_b                                  # (N, 3C)
    qkv = qkv[order_pad]                                        # (Npad, 3C)
    qkv = qkv.reshape(-1, patch_size, 3, h, d)
    qkv = jnp.transpose(qkv, (2, 0, 3, 1, 4))                   # (3, P, H, K, D)
    q = qkv[0].astype(jnp.float32)
    k = qkv[1].astype(jnp.float32)
    v = qkv[2]
    attn = jnp.einsum("phkd,phjd->phkj", q * scale, k)
    attn = jax.nn.softmax(attn.astype(jnp.float32), axis=-1).astype(v.dtype)
    out = jnp.einsum("phkj,phjd->phkd", attn, v)
    out = jnp.transpose(out, (0, 2, 1, 3)).reshape(-1, c)       # (Npad, C)
    out = out[inverse_unpad]                                    # (N, C)
    return out @ proj_w + proj_b


# ----------------------------------- main -----------------------------------

if __name__ == "__main__":
    C = 32                 # channels
    H = 2                  # num_heads
    PATCH_SIZE_MAX = 48    # SerializedAttention patch_size (non-flash: patch_size_max)
    counts = [100, 120]    # points per batch element
    N = int(sum(counts))

    offset = np.cumsum(counts).astype(np.int64)                 # batch2offset
    batch = np.repeat(np.arange(len(counts)), counts).astype(np.int64)

    key = jax.random.PRNGKey(0)
    k_feat, k_coord, k_qw, k_qb, k_pw, k_pb = jax.random.split(key, 6)

    feat = jax.random.normal(k_feat, (N, C), jnp.float32)

    # deterministic per-batch serialization code (stand-in for z-order encode);
    # SerializedAttention only consumes order + inverse index arrays.
    grid_coord = np.asarray(jax.random.randint(k_coord, (N, 3), 0, 64))
    code = grid_coord[:, 0] * 64 * 64 + grid_coord[:, 1] * 64 + grid_coord[:, 2]
    order = np.lexsort((code, batch)).astype(np.int64)          # batch-major serialization
    inverse = np.empty(N, np.int64)
    inverse[order] = np.arange(N)

    bincount = offset2bincount(offset)
    patch_size = int(min(bincount.min(), PATCH_SIZE_MAX))       # non-flash path
    pad, unpad = get_padding_and_inverse(offset, patch_size)
    order_pad = jnp.asarray(order[pad], jnp.int32)              # (Npad,)
    inverse_unpad = jnp.asarray(unpad[inverse], jnp.int32)      # (N,)

    # parameters (torch.nn.Linear equivalents, stored as (in, out))
    qkv_w = 0.02 * jax.random.normal(k_qw, (C, 3 * C), jnp.float32)
    qkv_b = 0.01 * jax.random.normal(k_qb, (3 * C,), jnp.float32)
    proj_w = 0.02 * jax.random.normal(k_pw, (C, C), jnp.float32)
    proj_b = 0.01 * jax.random.normal(k_pb, (C,), jnp.float32)

    out = serialized_attention(feat, qkv_w, qkv_b, proj_w, proj_b,
                               order_pad, inverse_unpad, H, patch_size)
    out = jax.block_until_ready(out)

    assert out.shape == (N, C)
    out_np = np.asarray(out)
    assert np.all(np.isfinite(out_np))

    ref = reference_serialized_attention(feat, qkv_w, qkv_b, proj_w, proj_b,
                                         order_pad, inverse_unpad, H, patch_size)
    ref_np = np.asarray(jax.block_until_ready(ref))
    np.testing.assert_allclose(out_np, ref_np, rtol=5e-2, atol=5e-3)

    print("KERNEL_OK")
</pallas_src>

<mosaic_0001>
module attributes {stable_mosaic.version = 11 : i64} {
  func.func @_fused_attn_kernel(%arg0: i32, %arg1: memref<96x32xf32, #tpu.memory_space<vmem>>, %arg2: memref<32x96xf32, #tpu.memory_space<vmem>>, %arg3: memref<1x96xf32, #tpu.memory_space<vmem>>, %arg4: memref<32x32xf32, #tpu.memory_space<vmem>>, %arg5: memref<1x32xf32, #tpu.memory_space<vmem>>, %arg6: memref<96x32xf32, #tpu.memory_space<vmem>>) attributes {dimension_semantics = [#tpu.dimension_semantics<parallel>], iteration_bounds = array<i64: 3>, scalar_prefetch = 0 : i64, scratch_operands = 0 : i64, tpu.core_type = #tpu.core_type<tc>, window_params = [{transform_indices = @transform_0, window_bounds = array<i64: 96, 32>}, {pipeline_mode = #tpu.pipeline_mode<synchronous>, transform_indices = @transform_1, window_bounds = array<i64: 32, 96>}, {pipeline_mode = #tpu.pipeline_mode<synchronous>, transform_indices = @transform_2, window_bounds = array<i64: 1, 96>}, {pipeline_mode = #tpu.pipeline_mode<synchronous>, transform_indices = @transform_3, window_bounds = array<i64: 32, 32>}, {pipeline_mode = #tpu.pipeline_mode<synchronous>, transform_indices = @transform_4, window_bounds = array<i64: 1, 32>}, {transform_indices = @transform_5, window_bounds = array<i64: 96, 32>}]} {
    %c0 = arith.constant 0 : index
    %c0_0 = arith.constant 0 : index
    %0 = vector.load %arg1[%c0, %c0_0] : memref<96x32xf32, #tpu.memory_space<vmem>>, vector<96x32xf32>
    %c0_1 = arith.constant 0 : index
    %c0_2 = arith.constant 0 : index
    %1 = vector.load %arg2[%c0_1, %c0_2] : memref<32x96xf32, #tpu.memory_space<vmem>>, vector<32x96xf32>
    %cst = arith.constant dense<0.000000e+00> : vector<96x96xf32>
    %2 = tpu.matmul %0, %1, %cst {dimension_numbers = #tpu.dot_dimension_numbers<[1], [0], [0], [1], [0, 0, 1, 1], [], []>} : vector<96x32xf32>, vector<32x96xf32>, vector<96x96xf32> -> vector<96x96xf32>
    %c0_3 = arith.constant 0 : index
    %c0_4 = arith.constant 0 : index
    %3 = vector.load %arg3[%c0_3, %c0_4] : memref<1x96xf32, #tpu.memory_space<vmem>>, vector<1x96xf32>
    %4 = vector.broadcast %3 : vector<1x96xf32> to vector<96x96xf32>
    %5 = arith.addf %2, %4 : vector<96x96xf32>
    %6 = vector.extract_strided_slice %5 {offsets = [0, 0], sizes = [96, 16], strides = [1, 1]} : vector<96x96xf32> to vector<96x16xf32>
    %7 = vector.shape_cast %6 : vector<96x16xf32> to vector<2x48x16xf32>
    %8 = vector.extract_strided_slice %5 {offsets = [0, 16], sizes = [96, 16], strides = [1, 1]} : vector<96x96xf32> to vector<96x16xf32>
    %9 = vector.shape_cast %8 : vector<96x16xf32> to vector<2x48x16xf32>
    %10 = tpu.concatenate %7, %9 in 0 : vector<2x48x16xf32>, vector<2x48x16xf32> -> vector<4x48x16xf32>
    %11 = vector.extract_strided_slice %5 {offsets = [0, 32], sizes = [96, 16], strides = [1, 1]} : vector<96x96xf32> to vector<96x16xf32>
    %12 = vector.shape_cast %11 : vector<96x16xf32> to vector<2x48x16xf32>
    %13 = vector.extract_strided_slice %5 {offsets = [0, 48], sizes = [96, 16], strides = [1, 1]} : vector<96x96xf32> to vector<96x16xf32>
    %14 = vector.shape_cast %13 : vector<96x16xf32> to vector<2x48x16xf32>
    %15 = tpu.concatenate %12, %14 in 0 : vector<2x48x16xf32>, vector<2x48x16xf32> -> vector<4x48x16xf32>
    %16 = vector.extract_strided_slice %5 {offsets = [0, 64], sizes = [96, 16], strides = [1, 1]} : vector<96x96xf32> to vector<96x16xf32>
    %17 = vector.shape_cast %16 : vector<96x16xf32> to vector<2x48x16xf32>
    %18 = vector.extract_strided_slice %5 {offsets = [0, 80], sizes = [96, 16], strides = [1, 1]} : vector<96x96xf32> to vector<96x16xf32>
    %19 = vector.shape_cast %18 : vector<96x16xf32> to vector<2x48x16xf32>
    %20 = tpu.concatenate %17, %19 in 0 : vector<2x48x16xf32>, vector<2x48x16xf32> -> vector<4x48x16xf32>
    "tpu.trace_start"() <{level = 10 : i32, message = "bkd,bjd->bkj"}> : () -> ()
    %cst_5 = arith.constant dense<0.000000e+00> : vector<4x48x48xf32>
    %21 = tpu.matmul %10, %15, %cst_5 {dimension_numbers = #tpu.dot_dimension_numbers<[2], [2], [1], [1], [0, 0, 0, 1, 1, 1], [0], [0]>} : vector<4x48x16xf32>, vector<4x48x16xf32>, vector<4x48x48xf32> -> vector<4x48x48xf32>
    "tpu.trace_stop"() : () -> ()
    %cst_6 = arith.constant dense<0xFF800000> : vector<4x48xf32>
    %22 = vector.multi_reduction <maximumf>, %21, %cst_6 [2] : vector<4x48x48xf32> to vector<4x48xf32>
    %23 = vector.shape_cast %22 : vector<4x48xf32> to vector<4x48x1xf32>
    %24 = vector.broadcast %23 : vector<4x48x1xf32> to vector<4x48x48xf32>
    %25 = arith.subf %21, %24 : vector<4x48x48xf32>
    %26 = math.exp %25 : vector<4x48x48xf32>
    %cst_7 = arith.constant dense<0.000000e+00> : vector<4x48xf32>
    %27 = vector.multi_reduction <add>, %26, %cst_7 [2] : vector<4x48x48xf32> to vector<4x48xf32>
    %28 = vector.shape_cast %27 : vector<4x48xf32> to vector<4x48x1xf32>
    "tpu.trace_start"() <{level = 10 : i32, message = "bkj,bjd->bkd"}> : () -> ()
    %cst_8 = arith.constant dense<0.000000e+00> : vector<4x48x16xf32>
    %29 = tpu.matmul %26, %20, %cst_8 {dimension_numbers = #tpu.dot_dimension_numbers<[2], [1], [1], [2], [0, 0, 0, 1, 1, 2], [0], [0]>} : vector<4x48x48xf32>, vector<4x48x16xf32>, vector<4x48x16xf32> -> vector<4x48x16xf32>
    "tpu.trace_stop"() : () -> ()
    %30 = tpu.reciprocal %28 {approx = true} : vector<4x48x1xf32> -> vector<4x48x1xf32>
    %31 = vector.broadcast %30 : vector<4x48x1xf32> to vector<4x48x16xf32>
    %32 = arith.mulf %29, %31 : vector<4x48x16xf32>
    %33 = vector.extract_strided_slice %32 {offsets = [0, 0, 0], sizes = [2, 48, 16], strides = [1, 1, 1]} : vector<4x48x16xf32> to vector<2x48x16xf32>
    %34 = vector.shape_cast %33 : vector<2x48x16xf32> to vector<96x16xf32>
    %35 = vector.extract_strided_slice %32 {offsets = [2, 0, 0], sizes = [2, 48, 16], strides = [1, 1, 1]} : vector<4x48x16xf32> to vector<2x48x16xf32>
    %36 = vector.shape_cast %35 : vector<2x48x16xf32> to vector<96x16xf32>
    %37 = tpu.concatenate %34, %36 in 1 : vector<96x16xf32>, vector<96x16xf32> -> vector<96x32xf32>
    %c0_9 = arith.constant 0 : index
    %c0_10 = arith.constant 0 : index
    %38 = vector.load %arg4[%c0_9, %c0_10] : memref<32x32xf32, #tpu.memory_space<vmem>>, vector<32x32xf32>
    %cst_11 = arith.constant dense<0.000000e+00> : vector<96x32xf32>
    %39 = tpu.matmul %37, %38, %cst_11 {dimension_numbers = #tpu.dot_dimension_numbers<[1], [0], [0], [1], [0, 0, 1, 1], [], []>} : vector<96x32xf32>, vector<32x32xf32>, vector<96x32xf32> -> vector<96x32xf32>
    %c0_12 = arith.constant 0 : index
    %c0_13 = arith.constant 0 : index
    %40 = vector.load %arg5[%c0_12, %c0_13] : memref<1x32xf32, #tpu.memory_space<vmem>>, vector<1x32xf32>
    %41 = vector.broadcast %40 : vector<1x32xf32> to vector<96x32xf32>
    %42 = arith.addf %39, %41 : vector<96x32xf32>
    %c0_14 = arith.constant 0 : index
    %c0_15 = arith.constant 0 : index
    %43 = vector.load %arg6[%c0_14, %c0_15] : memref<96x32xf32, #tpu.memory_space<vmem>>, vector<96x32xf32>
    tpu.vector_store %arg6[%c0_14, %c0_15], %42 {strides = array<i32>} : memref<96x32xf32, #tpu.memory_space<vmem>>, vector<96x32xf32>,
    return
  }
  func.func @transform_0(%arg0: i32) -> (i32, i32) {
    %c0_i32 = arith.constant 0 : i32
    %c0_i32_0 = arith.constant 0 : i32
    return %arg0, %c0_i32 : i32, i32
  }
  func.func @transform_1(%arg0: i32) -> (i32, i32) {
    %c0_i32 = arith.constant 0 : i32
    %c0_i32_0 = arith.constant 0 : i32
    %c0_i32_1 = arith.constant 0 : i32
    return %c0_i32, %c0_i32_0 : i32, i32
  }
  func.func @transform_2(%arg0: i32) -> (i32, i32) {
    %c0_i32 = arith.constant 0 : i32
    %c0_i32_0 = arith.constant 0 : i32
    %c0_i32_1 = arith.constant 0 : i32
    return %c0_i32, %c0_i32_0 : i32, i32
  }
  func.func @transform_3(%arg0: i32) -> (i32, i32) {
    %c0_i32 = arith.constant 0 : i32
    %c0_i32_0 = arith.constant 0 : i32
    %c0_i32_1 = arith.constant 0 : i32
    return %c0_i32, %c0_i32_0 : i32, i32
  }
  func.func @transform_4(%arg0: i32) -> (i32, i32) {
    %c0_i32 = arith.constant 0 : i32
    %c0_i32_0 = arith.constant 0 : i32
    %c0_i32_1 = arith.constant 0 : i32
    return %c0_i32, %c0_i32_0 : i32, i32
  }
  func.func @transform_5(%arg0: i32) -> (i32, i32) {
    %c0_i32 = arith.constant 0 : i32
    %c0_i32_0 = arith.constant 0 : i32
    return %arg0, %c0_i32 : i32, i32
  }
}

</mosaic_0001>

<llo_original>
// kernel: tpu_custom_call.1
$region0: #{tpu_custom_call.1}
  #allocation0 [shape = 'u32[]', space=smem, size = 0x4, offset = 0x4, fixed_abs, tag = 'smem constant byte address 0x4 - core index']
  #allocation1 [shape = 'u32[144,128]{1,0:T(1,128)}', space=vmem, size = 0x12000, scoped, tag = 'internal scratch']
  %s0 = inlined_call_operand.vmem [shape: f32[288,32], index: 0, kind: input, shape index: {}]
  %s1 = inlined_call_operand.vmem [shape: f32[32,96], index: 1, kind: input, shape index: {}]
  %s2 = inlined_call_operand.vmem [shape: f32[1,96], index: 2, kind: input, shape index: {}]
  %s3 = inlined_call_operand.vmem [shape: f32[32,32], index: 3, kind: input, shape index: {}]
  %s4 = inlined_call_operand.vmem [shape: f32[1,32], index: 4, kind: input, shape index: {}]
  %s5 = inlined_call_operand.vmem [shape: f32[288,32], index: 5, kind: output, shape index: {}]
  %s6 = sld [smem:[#allocation0]]
  $region53: #{tpu_custom_call.1} parent=0
    _
  %s8 = ssub.s32 1, %s6
  %s9 = scalar_select 0, %s8, %s6
  loop: start=0, step=1, limit=5
  $region2: #{tpu_custom_call.1} parent=0 // loop_pre_header
    _
  $region3: #{tpu_custom_call.1} parent=0 // loop_header
    %s11 = sphi 0, %s15
    %p12 = scmp.ge.s32.totalorder %s11, 5
    %s21 = sphi 0, %s23
    %s24 = sphi 0, %s21
    %s25 = sphi 0, %s24
    %s41 = sphi 0, %s25
    %s45 = sphi 0, %s45
    %s47 = sphi 0, %s45
    %s48 = sphi 0, %s47
    %s62 = sphi 0, %s48
    %s66 = sphi 0, %s66
    %s68 = sphi 0, %s66
    %s69 = sphi 0, %s68
    %s83 = sphi 0, %s69
    %s87 = sphi 0, %s87
    %s89 = sphi 0, %s87
    %s90 = sphi 0, %s89
    %s104 = sphi 0, %s90
    %s108 = sphi 0, %s108
    %s110 = sphi 0, %s108
    %s111 = sphi 0, %s110
    %s125 = sphi 0, %s111
    %s131 = sphi 0, %s133
    %s134 = sphi 0, %s131
    %s135 = sphi 0, %s134
    %s151 = sphi 0, %s135
  $region4: #{tpu_custom_call.1} parent=0 // loop_header_branch
    %14 = sbr.rel (%p12) target = $region8
  $region5: #{tpu_custom_call.1} parent=0 // loop_body
    %s16 = ssub.s32 %s11, 1
    %s17 = ssub.s32 %s11, 2
    %s18 = sadd.s32 %s11, 1
    %s19 = ssub.s32 %s11, %s18
    %p20 = scmp.eq.s32.totalorder %s19, 0
    %s22 = sadd.s32 %s21, 1
    %s23 = scalar_select %p20, %s21, %s22
    %p26 = pneg %p20
    %p27 = scmp.eq.s32.totalorder %s11, 2
    %p28 = por %p26, %p27
    %p29 = scmp.ne.s32.totalorder %s21, %s24
    %p30 = scmp.eq.s32.totalorder %s11, 0
    %p31 = por %p29, %p30
    %p32 = scmp.ne.s32.totalorder %s21, %s24
    %p33 = scmp.eq.s32.totalorder %s16, 2
    %p34 = por %p32, %p33
    %p35 = scmp.ne.s32.totalorder %s24, %s25
    %p36 = scmp.eq.s32.totalorder %s16, 0
    %p37 = por %p35, %p36
    %p38 = scmp.ne.s32.totalorder %s24, %s25
    %p39 = scmp.eq.s32.totalorder %s17, 2
    %p40 = por %p38, %p39
    %p42 = scmp.ne.s32.totalorder %s25, %s41
    %p43 = scmp.eq.s32.totalorder %s17, 0
    %p44 = por %p42, %p43
    %s46 = sadd.s32 %s45, 1
    %p49 = scmp.eq.s32.totalorder %s11, 2
    %p50 = scmp.ne.s32.totalorder %s45, %s47
    %p51 = scmp.eq.s32.totalorder %s11, 0
    %p52 = por %p50, %p51
    %p53 = scmp.ne.s32.totalorder %s45, %s47
    %p54 = scmp.eq.s32.totalorder %s16, 2
    %p55 = por %p53, %p54
    %p56 = scmp.ne.s32.totalorder %s47, %s48
    %p57 = scmp.eq.s32.totalorder %s16, 0
    %p58 = por %p56, %p57
    %p59 = scmp.ne.s32.totalorder %s47, %s48
    %p60 = scmp.eq.s32.totalorder %s17, 2
    %p61 = por %p59, %p60
    %p63 = scmp.ne.s32.totalorder %s48, %s62
    %p64 = scmp.eq.s32.totalorder %s17, 0
    %p65 = por %p63, %p64
    %s67 = sadd.s32 %s66, 1
    %p70 = scmp.eq.s32.totalorder %s11, 2
    %p71 = scmp.ne.s32.totalorder %s66, %s68
    %p72 = scmp.eq.s32.totalorder %s11, 0
    %p73 = por %p71, %p72
    %p74 = scmp.ne.s32.totalorder %s66, %s68
    %p75 = scmp.eq.s32.totalorder %s16, 2
    %p76 = por %p74, %p75
    %p77 = scmp.ne.s32.totalorder %s68, %s69
    %p78 = scmp.eq.s32.totalorder %s16, 0
    %p79 = por %p77, %p78
    %p80 = scmp.ne.s32.totalorder %s68, %s69
    %p81 = scmp.eq.s32.totalorder %s17, 2
    %p82 = por %p80, %p81
    %p84 = scmp.ne.s32.totalorder %s69, %s83
    %p85 = scmp.eq.s32.totalorder %s17, 0
    %p86 = por %p84, %p85
    %s88 = sadd.s32 %s87, 1
    %p91 = scmp.eq.s32.totalorder %s11, 2
    %p92 = scmp.ne.s32.totalorder %s87, %s89
    %p93 = scmp.eq.s32.totalorder %s11, 0
    %p94 = por %p92, %p93
    %p95 = scmp.ne.s32.totalorder %s87, %s89
    %p96 = scmp.eq.s32.totalorder %s16, 2
    %p97 = por %p95, %p96
    %p98 = scmp.ne.s32.totalorder %s89, %s90
    %p99 = scmp.eq.s32.totalorder %s16, 0
    %p100 = por %p98, %p99
    %p101 = scmp.ne.s32.totalorder %s89, %s90
    %p102 = scmp.eq.s32.totalorder %s17, 2
    %p103 = por %p101, %p102
    %p105 = scmp.ne.s32.totalorder %s90, %s104
    %p106 = scmp.eq.s32.totalorder %s17, 0
    %p107 = por %p105, %p106
    %s109 = sadd.s32 %s108, 1
    %p112 = scmp.eq.s32.totalorder %s11, 2
    %p113 = scmp.ne.s32.totalorder %s108, %s110
    %p114 = scmp.eq.s32.totalorder %s11, 0
    %p115 = por %p113, %p114
    %p116 = scmp.ne.s32.totalorder %s108, %s110
    %p117 = scmp.eq.s32.totalorder %s16, 2
    %p118 = por %p116, %p117
    %p119 = scmp.ne.s32.totalorder %s110, %s111
    %p120 = scmp.eq.s32.totalorder %s16, 0
    %p121 = por %p119, %p120
    %p122 = scmp.ne.s32.totalorder %s110, %s111
    %p123 = scmp.eq.s32.totalorder %s17, 2
    %p124 = por %p122, %p123
    %p126 = scmp.ne.s32.totalorder %s111, %s125
    %p127 = scmp.eq.s32.totalorder %s17, 0
    %p128 = por %p126, %p127
    %s129 = ssub.s32 %s11, %s18
    %p130 = scmp.eq.s32.totalorder %s129, 0
    %s132 = sadd.s32 %s131, 1
    %s133 = scalar_select %p130, %s131, %s132
    %p136 = pneg %p130
    %p137 = scmp.eq.s32.totalorder %s11, 2
    %p138 = por %p136, %p137
    %p139 = scmp.ne.s32.totalorder %s131, %s134
    %p140 = scmp.eq.s32.totalorder %s11, 0
    %p141 = por %p139, %p140
    %p142 = scmp.ne.s32.totalorder %s131, %s134
    %p143 = scmp.eq.s32.totalorder %s16, 2
    %p144 = por %p142, %p143
    %p145 = scmp.ne.s32.totalorder %s134, %s135
    %p146 = scmp.eq.s32.totalorder %s16, 0
    %p147 = por %p145, %p146
    %p148 = scmp.ne.s32.totalorder %s134, %s135
    %p149 = scmp.eq.s32.totalorder %s17, 2
    %p150 = por %p148, %p149
    %p152 = scmp.ne.s32.totalorder %s135, %s151
    %p153 = scmp.eq.s32.totalorder %s17, 0
    %p154 = por %p152, %p153
    %p155 = scmp.le.s32.totalorder 1, %s11
    %p156 = scmp.lt.s32.totalorder %s11, 4
    %p157 = pnand %p155, %p156
    %p158 = pneg %p157
    // Predicated region
    $region9: #{tpu_custom_call.1} parent=5 // pred_check
      _
    $region10: #{tpu_custom_call.1} parent=5 // pred_check_branch
      %160 = sbr.rel (%p157) target = $region12
    $region11: #{tpu_custom_call.1} parent=5 // pred_region
      %s161 = ssub.s32 %s11, 1
      // Predicated region
      $region13: #{tpu_custom_call.1} parent=11 // pred_check
        %p162 = pneg %p58
      $region14: #{tpu_custom_call.1} parent=11 // pred_check_branch
        %164 = sbr.rel (%p162) target = $region16
      $region15: #{tpu_custom_call.1} parent=11 // pred_region
        _
      $region16: #{tpu_custom_call.1} parent=11 // pred_fallthru
        _
      // Predicated region
      $region17: #{tpu_custom_call.1} parent=11 // pred_check
        %p165 = pneg %p79
      $region18: #{tpu_custom_call.1} parent=11 // pred_check_branch
        %167 = sbr.rel (%p165) target = $region20
      $region19: #{tpu_custom_call.1} parent=11 // pred_region
        _
      $region20: #{tpu_custom_call.1} parent=11 // pred_fallthru
        _
      // Predicated region
      $region21: #{tpu_custom_call.1} parent=11 // pred_check
        %p168 = pneg %p100
      $region22: #{tpu_custom_call.1} parent=11 // pred_check_branch
        %170 = sbr.rel (%p168) target = $region24
      $region23: #{tpu_custom_call.1} parent=11 // pred_region
        _
      $region24: #{tpu_custom_call.1} parent=11 // pred_fallthru
        _
      // Predicated region
      $region25: #{tpu_custom_call.1} parent=11 // pred_check
        %p171 = pneg %p121
      $region26: #{tpu_custom_call.1} parent=11 // pred_check_branch
        %173 = sbr.rel (%p171) target = $region28
      $region27: #{tpu_custom_call.1} parent=11 // pred_region
        _
      $region28: #{tpu_custom_call.1} parent=11 // pred_fallthru
        _
    $region12: #{tpu_custom_call.1} parent=5 // pred_fallthru
      _
    %p174 = scmp.lt.s32.totalorder %s11, 3
    // Predicated region
    $region29: #{tpu_custom_call.1} parent=5 // pred_check
      %p175 = pneg %p174
    $region30: #{tpu_custom_call.1} parent=5 // pred_check_branch
      %177 = sbr.rel (%p175) target = $region32
    $region31: #{tpu_custom_call.1} parent=5 // pred_region
      // Predicated region
      $region33: #{tpu_custom_call.1} parent=31 // pred_check
        %p178 = pneg %p31
      $region34: #{tpu_custom_call.1} parent=31 // pred_check_branch
        %180 = sbr.rel (%p178) target = $region36
      $region35: #{tpu_custom_call.1} parent=31 // pred_region
        %s181 = smul.u32 12, %s11
        %p182 = scmp.lt.s32.totalorder %s181, 35
        %s183 = scalar_select %p182, %s181, 35
        %s184 = smul.addr %s183, 8
        %s185 = scalar_lea.vmem %s0, %s184
        %s186 = smul.u32 12, %s11
      $region36: #{tpu_custom_call.1} parent=31 // pred_fallthru
        _
    $region32: #{tpu_custom_call.1} parent=5 // pred_fallthru
      _
    %p187 = scmp.le.s32.totalorder 1, %s11
    %p188 = scmp.lt.s32.totalorder %s11, 4
    %p189 = pnand %p187, %p188
    %p190 = pneg %p189
    // Predicated region
    $region37: #{tpu_custom_call.1} parent=5 // pred_check
      _
    $region38: #{tpu_custom_call.1} parent=5 // pred_check_branch
      %192 = sbr.rel (%p189) target = $region40
    $region39: #{tpu_custom_call.1} parent=5 // pred_region
      %s193 = ssub.s32 %s11, 1
      %s194 = smul.u32 12, %s16
      %p195 = scmp.lt.s32.totalorder %s194, 35
      %s196 = scalar_select %p195, %s194, 35
      %s197 = smul.addr %s196, 8
      %s198 = scalar_lea.vmem %s0, %s197
      %p199 = pneg %p37
      %p200 = pneg %p34
      %p201 = pneg %p58
      %p202 = pneg %p55
      %p203 = pneg %p79
      %p204 = pneg %p76
      %p205 = pneg %p100
      %p206 = pneg %p97
      %p207 = pneg %p121
      %p208 = pneg %p118
      %p209 = pneg %p147
      %p210 = pneg %p144
      %s211 = smul.u32 12, %s16
      %p212 = scmp.lt.s32.totalorder %s211, 35
      %s213 = scalar_select %p212, %s211, 35
      %s214 = smul.addr %s213, 8
      %s215 = scalar_lea.vmem %s5, %s214
      %s216 = smul.u32 12, %s16
      %p217 = scmp.lt.s32.totalorder %s216, 35
      %s218 = scalar_select %p217, %s216, 35
      %s219 = smul.addr %s218, 8
      %s220 = scalar_lea.vmem %s0, %s219
      %s221 = smul.u32 12, %s16
      %s222 = smul.u32 12, %s16
      %p223 = scmp.lt.s32.totalorder %s222, 35
      %s224 = scalar_select %p223, %s222, 35
      %s225 = smul.addr %s224, 8
      %s226 = scalar_lea.vmem %s5, %s225
      %s227 = smul.u32 12, %s16
      %v228 = vld [vmem:[%s220] sm:$0xff]
      %v229 = vld [vmem:[%s220 + $0x8] sm:$0xff]
      %v230 = vld [vmem:[%s220 + $0x10] sm:$0xff]
      %v231 = vld [vmem:[%s220 + $0x18] sm:$0xff]
      %v232 = vld [vmem:[%s220 + $0x20] sm:$0xff]
      %v233 = vld [vmem:[%s220 + $0x28] sm:$0xff]
      %v234 = vld [vmem:[%s220 + $0x30] sm:$0xff]
      %v235 = vld [vmem:[%s220 + $0x38] sm:$0xff]
      %v236 = vld [vmem:[%s220 + $0x40] sm:$0xff]
      %v237 = vld [vmem:[%s220 + $0x48] sm:$0xff]
      %v238 = vld [vmem:[%s220 + $0x50] sm:$0xff]
      %v239 = vld [vmem:[%s220 + $0x58] sm:$0xff]
      %v240 = vld [vmem:[%s1] sm:$0xff]
      %v241 = vld [vmem:[%s1 + $0x8] sm:$0xff]
      %v242 = vld [vmem:[%s1 + $0x10] sm:$0xff]
      %v243 = vld [vmem:[%s1 + $0x18] sm:$0xff]
      %v244 = vld [vmem:[%s2] sm:$0x1]
      %v246 = vlaneseq
      %v247 = vshrl.u32 %v246, 7
      %v248 = vsub.s32 0, %v247
      %v249 = vrot.slane %v244, %v248
      %vm251 = vcmask 261120
      %v253 = vsel %vm251, %v228, 0
      %v256 = vsel %vm251, %v229, 0
      %v259 = vsel %vm251, %v230, 0
      %v262 = vsel %vm251, %v231, 0
      %v265 = vsel %vm251, %v232, 0
      %v268 = vsel %vm251, %v233, 0
      %v271 = vsel %vm251, %v234, 0
      %v274 = vsel %vm251, %v235, 0
      %v277 = vsel %vm251, %v236, 0
      %v280 = vsel %vm251, %v237, 0
      %v283 = vsel %vm251, %v238, 0
      %v286 = vsel %vm251, %v239, 0
      %288 = vmatprep.subr.mxu0 0.0
      %289 = vmatpush1.msra.mxu0 %v240
      %290 = vmatprep.subr.mxu0 0.0
      %291 = vmatpush1.msra.mxu0 %v241
      %292 = vmatprep.subr.mxu0 0.0
      %293 = vmatpush1.msra.mxu0 %v242
      %294 = vmatprep.subr.mxu0 0.0
      %295 = vmatpush1.msra.mxu0 %v243
      %296 = vmatprep.subr.mxu0 0.0
      %297 = vmatpush1.msra.mxu0 0.0
      %298 = vmatprep.subr.mxu0 0.0
      %299 = vmatpush1.msra.mxu0 0.0
      %300 = vmatprep.subr.mxu0 0.0
      %301 = vmatpush1.msra.mxu0 0.0
      %302 = vmatprep.subr.mxu0 0.0
      %303 = vmatpush1.msra.mxu0 0.0
      %304 = vmatprep.subr.mxu0 0.0
      %305 = vmatpush1.msra.mxu0 0.0
      %306 = vmatprep.subr.mxu0 0.0
      %307 = vmatpush1.msra.mxu0 0.0
      %308 = vmatprep.subr.mxu0 0.0
      %309 = vmatpush1.msra.mxu0 0.0
      %310 = vmatprep.subr.mxu0 0.0
      %311 = vmatpush1.msra.mxu0 0.0
      %312 = vmatprep.subr.mxu0 0.0
      %313 = vmatpush1.msra.mxu0 0.0
      %314 = vmatprep.subr.mxu0 0.0
      %315 = vmatpush1.msra.mxu0 0.0
      %316 = vmatprep.subr.mxu0 0.0
      %317 = vmatpush1.msra.mxu0 0.0
      %318 = vmatprep.subr.mxu0 0.0
      %319 = vmatpush1.msra.mxu0 0.0
      %320 = vmatprep.subr.mxu0 0.0
      %321 = vmatpush1.msra.mxu0 0.0
      %322 = vmatprep.subr.mxu0 0.0
      %323 = vmatpush1.msra.mxu0 0.0
      %324 = vmatprep.subr.mxu0 0.0
      %325 = vmatpush1.msra.mxu0 0.0
      %326 = vmatprep.subr.mxu0 0.0
      %327 = vmatpush1.msra.mxu0 0.0
      %328 = vmatprep.subr.mxu0 0.0
      %329 = vmatpush1.msra.mxu0 0.0
      %330 = vmatprep.subr.mxu0 0.0
      %331 = vmatpush1.msra.mxu0 0.0
      %332 = vmatprep.subr.mxu0 0.0
      %333 = vmatpush1.msra.mxu0 0.0
      %334 = vmatprep.subr.mxu0 0.0
      %335 = vmatpush1.msra.mxu0 0.0
      %336 = vmatprep.subr.mxu0 0.0
      %337 = vmatpush1.msra.mxu0 0.0
      %338 = vmatprep.subr.mxu0 0.0
      %339 = vmatpush1.msra.mxu0 0.0
      %340 = vmatprep.subr.mxu0 0.0
      %341 = vmatpush1.msra.mxu0 0.0
      %342 = vmatprep.subr.mxu0 0.0
      %343 = vmatpush1.msra.mxu0 0.0
      %344 = vmatprep.subr.mxu0 0.0
      %345 = vmatpush1.msra.mxu0 0.0
      %346 = vmatprep.subr.mxu0 0.0
      %347 = vmatpush1.msra.mxu0 0.0
      %348 = vmatprep.subr.mxu0 0.0
      %349 = vmatpush1.msra.mxu0 0.0
      %350 = vmatprep.subr.mxu0 0.0
      %351 = vmatpush1.msra.mxu0 0.0
      %352 = vmatprep.mubr.f32.mxu0 0.0
      %353 = vmatmul.mubr.f32.gmra.mrb[0].mxu0 %v253
      %v354 = vpop.f32.mrb[0].mxu0
      %v355 = vadd.f32 %v249, %v354
      %v356 = vpop.f32.mrb[0].mxu0
      %357 = vmatprep.mubr.f32.mxu0 0.0
      %358 = vmatmul.mubr.f32.gmra.mrb[0].mxu0 %v256
      %v359 = vpop.f32.mrb[0].mxu0
      %v360 = vadd.f32 %v249, %v359
      %v361 = vpop.f32.mrb[0].mxu0
      %362 = vmatprep.mubr.f32.mxu0 0.0
      %363 = vmatmul.mubr.f32.gmra.mrb[0].mxu0 %v259
      %v364 = vpop.f32.mrb[0].mxu0
      %v365 = vadd.f32 %v249, %v364
      %v366 = vpop.f32.mrb[0].mxu0
      %367 = vmatprep.mubr.f32.mxu0 0.0
      %368 = vmatmul.mubr.f32.gmra.mrb[0].mxu0 %v262
      %v369 = vpop.f32.mrb[0].mxu0
      %v370 = vadd.f32 %v249, %v369
      %v371 = vpop.f32.mrb[0].mxu0
      %372 = vmatprep.mubr.f32.mxu0 0.0
      %373 = vmatmul.mubr.f32.gmra.mrb[0].mxu0 %v265
      %v374 = vpop.f32.mrb[0].mxu0
      %v375 = vadd.f32 %v249, %v374
      %v376 = vpop.f32.mrb[0].mxu0
      %377 = vmatprep.mubr.f32.mxu0 0.0
      %378 = vmatmul.mubr.f32.gmra.mrb[0].mxu0 %v268
      %v379 = vpop.f32.mrb[0].mxu0
      %v380 = vadd.f32 %v249, %v379
      %v381 = vpop.f32.mrb[0].mxu0
      %382 = vmatprep.mubr.f32.mxu0 0.0
      %383 = vmatmul.mubr.f32.gmra.mrb[0].mxu0 %v271
      %v384 = vpop.f32.mrb[0].mxu0
      %v385 = vadd.f32 %v249, %v384
      %v386 = vpop.f32.mrb[0].mxu0
      %387 = vmatprep.mubr.f32.mxu0 0.0
      %388 = vmatmul.mubr.f32.gmra.mrb[0].mxu0 %v274
      %v389 = vpop.f32.mrb[0].mxu0
      %v390 = vadd.f32 %v249, %v389
      %v391 = vpop.f32.mrb[0].mxu0
      %392 = vmatprep.mubr.f32.mxu0 0.0
      %393 = vmatmul.mubr.f32.gmra.mrb[0].mxu0 %v277
      %v394 = vpop.f32.mrb[0].mxu0
      %v395 = vadd.f32 %v249, %v394
      %v396 = vpop.f32.mrb[0].mxu0
      %397 = vmatprep.mubr.f32.mxu0 0.0
      %398 = vmatmul.mubr.f32.gmra.mrb[0].mxu0 %v280
      %v399 = vpop.f32.mrb[0].mxu0
      %v400 = vadd.f32 %v249, %v399
      %v401 = vpop.f32.mrb[0].mxu0
      %402 = vmatprep.mubr.f32.mxu0 0.0
      %403 = vmatmul.mubr.f32.gmra.mrb[0].mxu0 %v283
      %v404 = vpop.f32.mrb[0].mxu0
      %v405 = vadd.f32 %v249, %v404
      %v406 = vpop.f32.mrb[0].mxu0
      %407 = vmatprep.mubr.f32.mxu0 0.0
      %408 = vmatmul.mubr.f32.gmra.mrb[0].mxu0 %v286
      %v409 = vpop.f32.mrb[0].mxu0
      %v410 = vadd.f32 %v249, %v409
      %v411 = vpop.f32.mrb[0].mxu0
      %412 = vdwg.mxu0
      %425 = vrot.lane.b32.xlu0 %v355, 112
      %v426 = vpop.permute.xlu0 %425
      %427 = vrot.lane.b32.xlu0 %v360, 112
      %v428 = vpop.permute.xlu0 %427
      %429 = vrot.lane.b32.xlu0 %v365, 112
      %v430 = vpop.permute.xlu0 %429
      %431 = vrot.lane.b32.xlu0 %v370, 112
      %v432 = vpop.permute.xlu0 %431
      %433 = vrot.lane.b32.xlu0 %v375, 112
      %v434 = vpop.permute.xlu0 %433
      %435 = vrot.lane.b32.xlu0 %v380, 112
      %v436 = vpop.permute.xlu0 %435
      %437 = vrot.lane.b32.xlu0 %v385, 112
      %v438 = vpop.permute.xlu0 %437
      %439 = vrot.lane.b32.xlu0 %v390, 112
      %v440 = vpop.permute.xlu0 %439
      %441 = vrot.lane.b32.xlu0 %v395, 112
      %v442 = vpop.permute.xlu0 %441
      %443 = vrot.lane.b32.xlu0 %v400, 112
      %v444 = vpop.permute.xlu0 %443
      %445 = vrot.lane.b32.xlu0 %v405, 112
      %v446 = vpop.permute.xlu0 %445
      %447 = vrot.lane.b32.xlu0 %v410, 112
      %v448 = vpop.permute.xlu0 %447
      %449 = vrot.lane.b32.xlu0 %v355, 96
      %v450 = vpop.permute.xlu0 %449
      %451 = vrot.lane.b32.xlu0 %v360, 96
      %v452 = vpop.permute.xlu0 %451
      %453 = vrot.lane.b32.xlu0 %v365, 96
      %v454 = vpop.permute.xlu0 %453
      %455 = vrot.lane.b32.xlu0 %v370, 96
      %v456 = vpop.permute.xlu0 %455
      %457 = vrot.lane.b32.xlu0 %v375, 96
      %v458 = vpop.permute.xlu0 %457
      %459 = vrot.lane.b32.xlu0 %v380, 96
      %v460 = vpop.permute.xlu0 %459
      %vm461 = vcmask 130048
      %v462 = vsel %vm461, %v355, 0
      %v464 = vsel %vm461, %v360, 0
      %v466 = vsel %vm461, %v365, 0
      %v468 = vsel %vm461, %v370, 0
      %v470 = vsel %vm461, %v375, 0
      %v472 = vsel %vm461, %v380, 0
      %v474 = vsel %vm461, %v450, 0
      %v476 = vsel %vm461, %v452, 0
      %v478 = vsel %vm461, %v454, 0
      %v480 = vsel %vm461, %v456, 0
      %v482 = vsel %vm461, %v458, 0
      %v484 = vsel %vm461, %v460, 0
      %486 = vmatprep.subr.mxu0 0.0
      %487 = vmatpush1.xpose.msra.mxu0 %v474
      %488 = vmatprep.subr.mxu0 0.0
      %489 = vmatpush1.xpose.msra.mxu0 %v476
      %490 = vmatprep.subr.mxu0 0.0
      %491 = vmatpush1.xpose.msra.mxu0 %v478
      %492 = vmatprep.subr.mxu0 0.0
      %493 = vmatpush1.xpose.msra.mxu0 %v480
      %494 = vmatprep.subr.mxu0 0.0
      %495 = vmatpush1.xpose.msra.mxu0 %v482
      %496 = vmatprep.subr.mxu0 0.0
      %497 = vmatpush1.xpose.msra.mxu0 %v484
      %498 = vmatprep.subr.mxu0 0.0
      %499 = vmatpush1.xpose.msra.mxu0 0.0
      %500 = vmatprep.subr.mxu0 0.0
      %501 = vmatpush1.xpose.msra.mxu0 0.0
      %502 = vmatprep.subr.mxu0 0.0
      %503 = vmatpush1.xpose.msra.mxu0 0.0
      %504 = vmatprep.subr.mxu0 0.0
      %505 = vmatpush1.xpose.msra.mxu0 0.0
      %506 = vmatprep.subr.mxu0 0.0
      %507 = vmatpush1.xpose.msra.mxu0 0.0
      %508 = vmatprep.subr.mxu0 0.0
      %509 = vmatpush1.xpose.msra.mxu0 0.0
      %510 = vmatprep.subr.mxu0 0.0
      %511 = vmatpush1.xpose.msra.mxu0 0.0
      %512 = vmatprep.subr.mxu0 0.0
      %513 = vmatpush1.xpose.msra.mxu0 0.0
      %514 = vmatprep.subr.mxu0 0.0
      %515 = vmatpush1.xpose.msra.mxu0 0.0
      %516 = vmatprep.subr.mxu0 0.0
      %517 = vmatpush1.xpose.msra.mxu0 0.0
      %518 = vmatprep.subr.mxu0 0.0
      %519 = vmatpush1.xpose.msra.mxu0 0.0
      %520 = vmatprep.subr.mxu0 0.0
      %521 = vmatpush1.xpose.msra.mxu0 0.0
      %522 = vmatprep.subr.mxu0 0.0
      %523 = vmatpush1.xpose.msra.mxu0 0.0
      %524 = vmatprep.subr.mxu0 0.0
      %525 = vmatpush1.xpose.msra.mxu0 0.0
      %526 = vmatprep.subr.mxu0 0.0
      %527 = vmatpush1.xpose.msra.mxu0 0.0
      %528 = vmatprep.subr.mxu0 0.0
      %529 = vmatpush1.xpose.msra.mxu0 0.0
      %530 = vmatprep.subr.mxu0 0.0
      %531 = vmatpush1.xpose.msra.mxu0 0.0
      %532 = vmatprep.subr.mxu0 0.0
      %533 = vmatpush1.xpose.msra.mxu0 0.0
      %534 = vmatprep.subr.mxu0 0.0
      %535 = vmatpush1.xpose.msra.mxu0 0.0
      %536 = vmatprep.subr.mxu0 0.0
      %537 = vmatpush1.xpose.msra.mxu0 0.0
      %538 = vmatprep.subr.mxu0 0.0
      %539 = vmatpush1.xpose.msra.mxu0 0.0
      %540 = vmatprep.subr.mxu0 0.0
      %541 = vmatpush1.xpose.msra.mxu0 0.0
      %542 = vmatprep.subr.mxu0 0.0
      %543 = vmatpush1.xpose.msra.mxu0 0.0
      %544 = vmatprep.subr.mxu0 0.0
      %545 = vmatpush1.xpose.msra.mxu0 0.0
      %546 = vmatprep.subr.mxu0 0.0
      %547 = vmatpush1.xpose.msra.mxu0 0.0
      %548 = vmatprep.subr.mxu0 0.0
      %549 = vmatpush1.xpose.msra.mxu0 0.0
      %550 = vmatprep.mubr.f32.mxu0 0.0
      %551 = vmatmul.mubr.f32.gmra.mrb[0].mxu0 %v462
      %v552 = vpop.f32.mrb[0].mxu0
      %v553 = vadd.f32 0.0, %v552
      %v554 = vpop.f32.mrb[0].mxu0
      %555 = vmatprep.mubr.f32.mxu0 0.0
      %556 = vmatmul.mubr.f32.gmra.mrb[0].mxu0 %v464
      %v557 = vpop.f32.mrb[0].mxu0
      %v558 = vadd.f32 0.0, %v557
      %v559 = vpop.f32.mrb[0].mxu0
      %560 = vmatprep.mubr.f32.mxu0 0.0
      %561 = vmatmul.mubr.f32.gmra.mrb[0].mxu0 %v466
      %v562 = vpop.f32.mrb[0].mxu0
      %v563 = vadd.f32 0.0, %v562
      %v564 = vpop.f32.mrb[0].mxu0
      %565 = vmatprep.mubr.f32.mxu0 0.0
      %566 = vmatmul.mubr.f32.gmra.mrb[0].mxu0 %v468
      %v567 = vpop.f32.mrb[0].mxu0
      %v568 = vadd.f32 0.0, %v567
      %v569 = vpop.f32.mrb[0].mxu0
      %570 = vmatprep.mubr.f32.mxu0 0.0
      %571 = vmatmul.mubr.f32.gmra.mrb[0].mxu0 %v470
      %v572 = vpop.f32.mrb[0].mxu0
      %v573 = vadd.f32 0.0, %v572
      %v574 = vpop.f32.mrb[0].mxu0
      %575 = vmatprep.mubr.f32.mxu0 0.0
      %576 = vmatmul.mubr.f32.gmra.mrb[0].mxu0 %v472
      %v577 = vpop.f32.mrb[0].mxu0
      %v578 = vadd.f32 0.0, %v577
      %v579 = vpop.f32.mrb[0].mxu0
      %580 = vdwg.mxu0
      %581 = vrot.lane.b32.xlu0 %v385, 96
      %v582 = vpop.permute.xlu0 %581
      %583 = vrot.lane.b32.xlu0 %v390, 96
      %v584 = vpop.permute.xlu0 %583
      %585 = vrot.lane.b32.xlu0 %v395, 96
      %v586 = vpop.permute.xlu0 %585
      %587 = vrot.lane.b32.xlu0 %v400, 96
      %v588 = vpop.permute.xlu0 %587
      %589 = vrot.lane.b32.xlu0 %v405, 96
      %v590 = vpop.permute.xlu0 %589
      %591 = vrot.lane.b32.xlu0 %v410, 96
      %v592 = vpop.permute.xlu0 %591
      %v593 = vsel %vm461, %v385, 0
      %v595 = vsel %vm461, %v390, 0
      %v597 = vsel %vm461, %v395, 0
      %v599 = vsel %vm461, %v400, 0
      %v601 = vsel %vm461, %v405, 0
      %v603 = vsel %vm461, %v410, 0
      %v605 = vsel %vm461, %v582, 0
      %v607 = vsel %vm461, %v584, 0
      %v609 = vsel %vm461, %v586, 0
      %v611 = vsel %vm461, %v588, 0
      %v613 = vsel %vm461, %v590, 0
      %v615 = vsel %vm461, %v592, 0
      %617 = vmatprep.subr.mxu0 0.0
      %618 = vmatpush1.xpose.msra.mxu0 %v605
      %619 = vmatprep.subr.mxu0 0.0
      %620 = vmatpush1.xpose.msra.mxu0 %v607
      %621 = vmatprep.subr.mxu0 0.0
      %622 = vmatpush1.xpose.msra.mxu0 %v609
      %623 = vmatprep.subr.mxu0 0.0
      %624 = vmatpush1.xpose.msra.mxu0 %v611
      %625 = vmatprep.subr.mxu0 0.0
      %626 = vmatpush1.xpose.msra.mxu0 %v613
      %627 = vmatprep.subr.mxu0 0.0
      %628 = vmatpush1.xpose.msra.mxu0 %v615
      %629 = vmatprep.subr.mxu0 0.0
      %630 = vmatpush1.xpose.msra.mxu0 0.0
      %631 = vmatprep.subr.mxu0 0.0
      %632 = vmatpush1.xpose.msra.mxu0 0.0
      %633 = vmatprep.subr.mxu0 0.0
      %634 = vmatpush1.xpose.msra.mxu0 0.0
      %635 = vmatprep.subr.mxu0 0.0
      %636 = vmatpush1.xpose.msra.mxu0 0.0
      %637 = vmatprep.subr.mxu0 0.0
      %638 = vmatpush1.xpose.msra.mxu0 0.0
      %639 = vmatprep.subr.mxu0 0.0
      %640 = vmatpush1.xpose.msra.mxu0 0.0
      %641 = vmatprep.subr.mxu0 0.0
      %642 = vmatpush1.xpose.msra.mxu0 0.0
      %643 = vmatprep.subr.mxu0 0.0
      %644 = vmatpush1.xpose.msra.mxu0 0.0
      %645 = vmatprep.subr.mxu0 0.0
      %646 = vmatpush1.xpose.msra.mxu0 0.0
      %647 = vmatprep.subr.mxu0 0.0
      %648 = vmatpush1.xpose.msra.mxu0 0.0
      %649 = vmatprep.subr.mxu0 0.0
      %650 = vmatpush1.xpose.msra.mxu0 0.0
      %651 = vmatprep.subr.mxu0 0.0
      %652 = vmatpush1.xpose.msra.mxu0 0.0
      %653 = vmatprep.subr.mxu0 0.0
      %654 = vmatpush1.xpose.msra.mxu0 0.0
      %655 = vmatprep.subr.mxu0 0.0
      %656 = vmatpush1.xpose.msra.mxu0 0.0
      %657 = vmatprep.subr.mxu0 0.0
      %658 = vmatpush1.xpose.msra.mxu0 0.0
      %659 = vmatprep.subr.mxu0 0.0
      %660 = vmatpush1.xpose.msra.mxu0 0.0
      %661 = vmatprep.subr.mxu0 0.0
      %662 = vmatpush1.xpose.msra.mxu0 0.0
      %663 = vmatprep.subr.mxu0 0.0
      %664 = vmatpush1.xpose.msra.mxu0 0.0
      %665 = vmatprep.subr.mxu0 0.0
      %666 = vmatpush1.xpose.msra.mxu0 0.0
      %667 = vmatprep.subr.mxu0 0.0
      %668 = vmatpush1.xpose.msra.mxu0 0.0
      %669 = vmatprep.subr.mxu0 0.0
      %670 = vmatpush1.xpose.msra.mxu0 0.0
      %671 = vmatprep.subr.mxu0 0.0
      %672 = vmatpush1.xpose.msra.mxu0 0.0
      %673 = vmatprep.subr.mxu0 0.0
      %674 = vmatpush1.xpose.msra.mxu0 0.0
      %675 = vmatprep.subr.mxu0 0.0
      %676 = vmatpush1.xpose.msra.mxu0 0.0
      %677 = vmatprep.subr.mxu0 0.0
      %678 = vmatpush1.xpose.msra.mxu0 0.0
      %679 = vmatprep.subr.mxu0 0.0
      %680 = vmatpush1.xpose.msra.mxu0 0.0
      %681 = vmatprep.mubr.f32.mxu0 0.0
      %682 = vmatmul.mubr.f32.gmra.mrb[0].mxu0 %v593
      %v683 = vpop.f32.mrb[0].mxu0
      %v684 = vadd.f32 0.0, %v683
      %v685 = vpop.f32.mrb[0].mxu0
      %686 = vmatprep.mubr.f32.mxu0 0.0
      %687 = vmatmul.mubr.f32.gmra.mrb[0].mxu0 %v595
      %v688 = vpop.f32.mrb[0].mxu0
      %v689 = vadd.f32 0.0, %v688
      %v690 = vpop.f32.mrb[0].mxu0
      %691 = vmatprep.mubr.f32.mxu0 0.0
      %692 = vmatmul.mubr.f32.gmra.mrb[0].mxu0 %v597
      %v693 = vpop.f32.mrb[0].mxu0
      %v694 = vadd.f32 0.0, %v693
      %v695 = vpop.f32.mrb[0].mxu0
      %696 = vmatprep.mubr.f32.mxu0 0.0
      %697 = vmatmul.mubr.f32.gmra.mrb[0].mxu0 %v599
      %v698 = vpop.f32.mrb[0].mxu0
      %v699 = vadd.f32 0.0, %v698
      %v700 = vpop.f32.mrb[0].mxu0
      %701 = vmatprep.mubr.f32.mxu0 0.0
      %702 = vmatmul.mubr.f32.gmra.mrb[0].mxu0 %v601
      %v703 = vpop.f32.mrb[0].mxu0
      %v704 = vadd.f32 0.0, %v703
      %v705 = vpop.f32.mrb[0].mxu0
      %706 = vmatprep.mubr.f32.mxu0 0.0
      %707 = vmatmul.mubr.f32.gmra.mrb[0].mxu0 %v603
      %v708 = vpop.f32.mrb[0].mxu0
      %v709 = vadd.f32 0.0, %v708
      %v710 = vpop.f32.mrb[0].mxu0
      %711 = vdwg.mxu0
      %712 = vrot.lane.b32.xlu0 %v426, 96
      %v713 = vpop.permute.xlu0 %712
      %714 = vrot.lane.b32.xlu0 %v428, 96
      %v715 = vpop.permute.xlu0 %714
      %716 = vrot.lane.b32.xlu0 %v430, 96
      %v717 = vpop.permute.xlu0 %716
      %718 = vrot.lane.b32.xlu0 %v432, 96
      %v719 = vpop.permute.xlu0 %718
      %720 = vrot.lane.b32.xlu0 %v434, 96
      %v721 = vpop.permute.xlu0 %720
      %722 = vrot.lane.b32.xlu0 %v436, 96
      %v723 = vpop.permute.xlu0 %722
      %v724 = vsel %vm461, %v426, 0
      %v726 = vsel %vm461, %v428, 0
      %v728 = vsel %vm461, %v430, 0
      %v730 = vsel %vm461, %v432, 0
      %v732 = vsel %vm461, %v434, 0
      %v734 = vsel %vm461, %v436, 0
      %v736 = vsel %vm461, %v713, 0
      %v738 = vsel %vm461, %v715, 0
      %v740 = vsel %vm461, %v717, 0
      %v742 = vsel %vm461, %v719, 0
      %v744 = vsel %vm461, %v721, 0
      %v746 = vsel %vm461, %v723, 0
      %748 = vmatprep.subr.mxu0 0.0
      %749 = vmatpush1.xpose.msra.mxu0 %v736
      %750 = vmatprep.subr.mxu0 0.0
      %751 = vmatpush1.xpose.msra.mxu0 %v738
      %752 = vmatprep.subr.mxu0 0.0
      %753 = vmatpush1.xpose.msra.mxu0 %v740
      %754 = vmatprep.subr.mxu0 0.0
      %755 = vmatpush1.xpose.msra.mxu0 %v742
      %756 = vmatprep.subr.mxu0 0.0
      %757 = vmatpush1.xpose.msra.mxu0 %v744
      %758 = vmatprep.subr.mxu0 0.0
      %759 = vmatpush1.xpose.msra.mxu0 %v746
      %760 = vmatprep.subr.mxu0 0.0
      %761 = vmatpush1.xpose.msra.mxu0 0.0
      %762 = vmatprep.subr.mxu0 0.0
      %763 = vmatpush1.xpose.msra.mxu0 0.0
      %764 = vmatprep.subr.mxu0 0.0
      %765 = vmatpush1.xpose.msra.mxu0 0.0
      %766 = vmatprep.subr.mxu0 0.0
      %767 = vmatpush1.xpose.msra.mxu0 0.0
      %768 = vmatprep.subr.mxu0 0.0
      %769 = vmatpush1.xpose.msra.mxu0 0.0
      %770 = vmatprep.subr.mxu0 0.0
      %771 = vmatpush1.xpose.msra.mxu0 0.0
      %772 = vmatprep.subr.mxu0 0.0
      %773 = vmatpush1.xpose.msra.mxu0 0.0
      %774 = vmatprep.subr.mxu0 0.0
      %775 = vmatpush1.xpose.msra.mxu0 0.0
      %776 = vmatprep.subr.mxu0 0.0
      %777 = vmatpush1.xpose.msra.mxu0 0.0
      %778 = vmatprep.subr.mxu0 0.0
      %779 = vmatpush1.xpose.msra.mxu0 0.0
      %780 = vmatprep.subr.mxu0 0.0
      %781 = vmatpush1.xpose.msra.mxu0 0.0
      %782 = vmatprep.subr.mxu0 0.0
      %783 = vmatpush1.xpose.msra.mxu0 0.0
      %784 = vmatprep.subr.mxu0 0.0
      %785 = vmatpush1.xpose.msra.mxu0 0.0
      %786 = vmatprep.subr.mxu0 0.0
      %787 = vmatpush1.xpose.msra.mxu0 0.0
      %788 = vmatprep.subr.mxu0 0.0
      %789 = vmatpush1.xpose.msra.mxu0 0.0
      %790 = vmatprep.subr.mxu0 0.0
      %791 = vmatpush1.xpose.msra.mxu0 0.0
      %792 = vmatprep.subr.mxu0 0.0
      %793 = vmatpush1.xpose.msra.mxu0 0.0
      %794 = vmatprep.subr.mxu0 0.0
      %795 = vmatpush1.xpose.msra.mxu0 0.0
      %796 = vmatprep.subr.mxu0 0.0
      %797 = vmatpush1.xpose.msra.mxu0 0.0
      %798 = vmatprep.subr.mxu0 0.0
      %799 = vmatpush1.xpose.msra.mxu0 0.0
      %800 = vmatprep.subr.mxu0 0.0
      %801 = vmatpush1.xpose.msra.mxu0 0.0
      %802 = vmatprep.subr.mxu0 0.0
      %803 = vmatpush1.xpose.msra.mxu0 0.0
      %804 = vmatprep.subr.mxu0 0.0
      %805 = vmatpush1.xpose.msra.mxu0 0.0
      %806 = vmatprep.subr.mxu0 0.0
      %807 = vmatpush1.xpose.msra.mxu0 0.0
      %808 = vmatprep.subr.mxu0 0.0
      %809 = vmatpush1.xpose.msra.mxu0 0.0
      %810 = vmatprep.subr.mxu0 0.0
      %811 = vmatpush1.xpose.msra.mxu0 0.0
      %812 = vmatprep.mubr.f32.mxu0 0.0
      %813 = vmatmul.mubr.f32.gmra.mrb[0].mxu0 %v724
      %v814 = vpop.f32.mrb[0].mxu0
      %v815 = vadd.f32 0.0, %v814
      %v816 = vpop.f32.mrb[0].mxu0
      %817 = vmatprep.mubr.f32.mxu0 0.0
      %818 = vmatmul.mubr.f32.gmra.mrb[0].mxu0 %v726
      %v819 = vpop.f32.mrb[0].mxu0
      %v820 = vadd.f32 0.0, %v819
      %v821 = vpop.f32.mrb[0].mxu0
      %822 = vmatprep.mubr.f32.mxu0 0.0
      %823 = vmatmul.mubr.f32.gmra.mrb[0].mxu0 %v728
      %v824 = vpop.f32.mrb[0].mxu0
      %v825 = vadd.f32 0.0, %v824
      %v826 = vpop.f32.mrb[0].mxu0
      %827 = vmatprep.mubr.f32.mxu0 0.0
      %828 = vmatmul.mubr.f32.gmra.mrb[0].mxu0 %v730
      %v829 = vpop.f32.mrb[0].mxu0
      %v830 = vadd.f32 0.0, %v829
      %v831 = vpop.f32.mrb[0].mxu0
      %832 = vmatprep.mubr.f32.mxu0 0.0
      %833 = vmatmul.mubr.f32.gmra.mrb[0].mxu0 %v732
      %v834 = vpop.f32.mrb[0].mxu0
      %v835 = vadd.f32 0.0, %v834
      %v836 = vpop.f32.mrb[0].mxu0
      %837 = vmatprep.mubr.f32.mxu0 0.0
      %838 = vmatmul.mubr.f32.gmra.mrb[0].mxu0 %v734
      %v839 = vpop.f32.mrb[0].mxu0
      %v840 = vadd.f32 0.0, %v839
      %v841 = vpop.f32.mrb[0].mxu0
      %842 = vdwg.mxu0
      %843 = vrot.lane.b32.xlu0 %v438, 96
      %v844 = vpop.permute.xlu0 %843
      %845 = vrot.lane.b32.xlu0 %v440, 96
      %v846 = vpop.permute.xlu0 %845
      %847 = vrot.lane.b32.xlu0 %v442, 96
      %v848 = vpop.permute.xlu0 %847
      %849 = vrot.lane.b32.xlu0 %v444, 96
      %v850 = vpop.permute.xlu0 %849
      %851 = vrot.lane.b32.xlu0 %v446, 96
      %v852 = vpop.permute.xlu0 %851
      %853 = vrot.lane.b32.xlu0 %v448, 96
      %v854 = vpop.permute.xlu0 %853
      %v855 = vsel %vm461, %v438, 0
      %v857 = vsel %vm461, %v440, 0
      %v859 = vsel %vm461, %v442, 0
      %v861 = vsel %vm461, %v444, 0
      %v863 = vsel %vm461, %v446, 0
      %v865 = vsel %vm461, %v448, 0
      %v867 = vsel %vm461, %v844, 0
      %v869 = vsel %vm461, %v846, 0
      %v871 = vsel %vm461, %v848, 0
      %v873 = vsel %vm461, %v850, 0
      %v875 = vsel %vm461, %v852, 0
      %v877 = vsel %vm461, %v854, 0
      %879 = vmatprep.subr.mxu0 0.0
      %880 = vmatpush1.xpose.msra.mxu0 %v867
      %881 = vmatprep.subr.mxu0 0.0
      %882 = vmatpush1.xpose.msra.mxu0 %v869
      %883 = vmatprep.subr.mxu0 0.0
      %884 = vmatpush1.xpose.msra.mxu0 %v871
      %885 = vmatprep.subr.mxu0 0.0
      %886 = vmatpush1.xpose.msra.mxu0 %v873
      %887 = vmatprep.subr.mxu0 0.0
      %888 = vmatpush1.xpose.msra.mxu0 %v875
      %889 = vmatprep.subr.mxu0 0.0
      %890 = vmatpush1.xpose.msra.mxu0 %v877
      %891 = vmatprep.subr.mxu0 0.0
      %892 = vmatpush1.xpose.msra.mxu0 0.0
      %893 = vmatprep.subr.mxu0 0.0
      %894 = vmatpush1.xpose.msra.mxu0 0.0
      %895 = vmatprep.subr.mxu0 0.0
      %896 = vmatpush1.xpose.msra.mxu0 0.0
      %897 = vmatprep.subr.mxu0 0.0
      %898 = vmatpush1.xpose.msra.mxu0 0.0
      %899 = vmatprep.subr.mxu0 0.0
      %900 = vmatpush1.xpose.msra.mxu0 0.0
      %901 = vmatprep.subr.mxu0 0.0
      %902 = vmatpush1.xpose.msra.mxu0 0.0
      %903 = vmatprep.subr.mxu0 0.0
      %904 = vmatpush1.xpose.msra.mxu0 0.0
      %905 = vmatprep.subr.mxu0 0.0
      %906 = vmatpush1.xpose.msra.mxu0 0.0
      %907 = vmatprep.subr.mxu0 0.0
      %908 = vmatpush1.xpose.msra.mxu0 0.0
      %909 = vmatprep.subr.mxu0 0.0
      %910 = vmatpush1.xpose.msra.mxu0 0.0
      %911 = vmatprep.subr.mxu0 0.0
      %912 = vmatpush1.xpose.msra.mxu0 0.0
      %913 = vmatprep.subr.mxu0 0.0
      %914 = vmatpush1.xpose.msra.mxu0 0.0
      %915 = vmatprep.subr.mxu0 0.0
      %916 = vmatpush1.xpose.msra.mxu0 0.0
      %917 = vmatprep.subr.mxu0 0.0
      %918 = vmatpush1.xpose.msra.mxu0 0.0
      %919 = vmatprep.subr.mxu0 0.0
      %920 = vmatpush1.xpose.msra.mxu0 0.0
      %921 = vmatprep.subr.mxu0 0.0
      %922 = vmatpush1.xpose.msra.mxu0 0.0
      %923 = vmatprep.subr.mxu0 0.0
      %924 = vmatpush1.xpose.msra.mxu0 0.0
      %925 = vmatprep.subr.mxu0 0.0
      %926 = vmatpush1.xpose.msra.mxu0 0.0
      %927 = vmatprep.subr.mxu0 0.0
      %928 = vmatpush1.xpose.msra.mxu0 0.0
      %929 = vmatprep.subr.mxu0 0.0
      %930 = vmatpush1.xpose.msra.mxu0 0.0
      %931 = vmatprep.subr.mxu0 0.0
      %932 = vmatpush1.xpose.msra.mxu0 0.0
      %933 = vmatprep.subr.mxu0 0.0
      %934 = vmatpush1.xpose.msra.mxu0 0.0
      %935 = vmatprep.subr.mxu0 0.0
      %936 = vmatpush1.xpose.msra.mxu0 0.0
      %937 = vmatprep.subr.mxu0 0.0
      %938 = vmatpush1.xpose.msra.mxu0 0.0
      %939 = vmatprep.subr.mxu0 0.0
      %940 = vmatpush1.xpose.msra.mxu0 0.0
      %941 = vmatprep.subr.mxu0 0.0
      %942 = vmatpush1.xpose.msra.mxu0 0.0
      %943 = vmatprep.mubr.f32.mxu0 0.0
      %944 = vmatmul.mubr.f32.gmra.mrb[0].mxu0 %v855
      %v945 = vpop.f32.mrb[0].mxu0
      %v946 = vadd.f32 0.0, %v945
      %v947 = vpop.f32.mrb[0].mxu0
      %948 = vmatprep.mubr.f32.mxu0 0.0
      %949 = vmatmul.mubr.f32.gmra.mrb[0].mxu0 %v857
      %v950 = vpop.f32.mrb[0].mxu0
      %v951 = vadd.f32 0.0, %v950
      %v952 = vpop.f32.mrb[0].mxu0
      %953 = vmatprep.mubr.f32.mxu0 0.0
      %954 = vmatmul.mubr.f32.gmra.mrb[0].mxu0 %v859
      %v955 = vpop.f32.mrb[0].mxu0
      %v956 = vadd.f32 0.0, %v955
      %v957 = vpop.f32.mrb[0].mxu0
      %958 = vmatprep.mubr.f32.mxu0 0.0
      %959 = vmatmul.mubr.f32.gmra.mrb[0].mxu0 %v861
      %v960 = vpop.f32.mrb[0].mxu0
      %v961 = vadd.f32 0.0, %v960
      %v962 = vpop.f32.mrb[0].mxu0
      %963 = vmatprep.mubr.f32.mxu0 0.0
      %964 = vmatmul.mubr.f32.gmra.mrb[0].mxu0 %v863
      %v965 = vpop.f32.mrb[0].mxu0
      %v966 = vadd.f32 0.0, %v965
      %v967 = vpop.f32.mrb[0].mxu0
      %968 = vmatprep.mubr.f32.mxu0 0.0
      %969 = vmatmul.mubr.f32.gmra.mrb[0].mxu0 %v865
      %v970 = vpop.f32.mrb[0].mxu0
      %v971 = vadd.f32 0.0, %v970
      %v972 = vpop.f32.mrb[0].mxu0
      %973 = vdwg.mxu0
      %vm974 = vcmask 392192
      %v975 = vsel %vm974, %v553, -inf
      %976 = vmax.xlane.f32.xlu0 %v975
      %v977 = vpop.xlane.xlu0 %976
      %v978 = vsel %vm974, %v558, -inf
      %979 = vmax.xlane.f32.xlu0 %v978
      %v980 = vpop.xlane.xlu0 %979
      %v981 = vsel %vm974, %v563, -inf
      %982 = vmax.xlane.f32.xlu0 %v981
      %v983 = vpop.xlane.xlu0 %982
      %v984 = vsel %vm974, %v568, -inf
      %985 = vmax.xlane.f32.xlu0 %v984
      %v986 = vpop.xlane.xlu0 %985
      %v987 = vsel %vm974, %v573, -inf
      %988 = vmax.xlane.f32.xlu0 %v987
      %v989 = vpop.xlane.xlu0 %988
      %v990 = vsel %vm974, %v578, -inf
      %991 = vmax.xlane.f32.xlu0 %v990
      %v992 = vpop.xlane.xlu0 %991
      %v993 = vsel %vm974, %v684, -inf
      %994 = vmax.xlane.f32.xlu0 %v993
      %v995 = vpop.xlane.xlu0 %994
      %v996 = vsel %vm974, %v689, -inf
      %997 = vmax.xlane.f32.xlu0 %v996
      %v998 = vpop.xlane.xlu0 %997
      %v999 = vsel %vm974, %v694, -inf
      %1000 = vmax.xlane.f32.xlu0 %v999
      %v1001 = vpop.xlane.xlu0 %1000
      %v1002 = vsel %vm974, %v699, -inf
      %1003 = vmax.xlane.f32.xlu0 %v1002
      %v1004 = vpop.xlane.xlu0 %1003
      %v1005 = vsel %vm974, %v704, -inf
      %1006 = vmax.xlane.f32.xlu0 %v1005
      %v1007 = vpop.xlane.xlu0 %1006
      %v1008 = vsel %vm974, %v709, -inf
      %1009 = vmax.xlane.f32.xlu0 %v1008
      %v1010 = vpop.xlane.xlu0 %1009
      %v1011 = vsel %vm974, %v815, -inf
      %1012 = vmax.xlane.f32.xlu0 %v1011
      %v1013 = vpop.xlane.xlu0 %1012
      %v1014 = vsel %vm974, %v820, -inf
      %1015 = vmax.xlane.f32.xlu0 %v1014
      %v1016 = vpop.xlane.xlu0 %1015
      %v1017 = vsel %vm974, %v825, -inf
      %1018 = vmax.xlane.f32.xlu0 %v1017
      %v1019 = vpop.xlane.xlu0 %1018
      %v1020 = vsel %vm974, %v830, -inf
      %1021 = vmax.xlane.f32.xlu0 %v1020
      %v1022 = vpop.xlane.xlu0 %1021
      %v1023 = vsel %vm974, %v835, -inf
      %1024 = vmax.xlane.f32.xlu0 %v1023
      %v1025 = vpop.xlane.xlu0 %1024
      %v1026 = vsel %vm974, %v840, -inf
      %1027 = vmax.xlane.f32.xlu0 %v1026
      %v1028 = vpop.xlane.xlu0 %1027
      %v1029 = vsel %vm974, %v946, -inf
      %1030 = vmax.xlane.f32.xlu0 %v1029
      %v1031 = vpop.xlane.xlu0 %1030
      %v1032 = vsel %vm974, %v951, -inf
      %1033 = vmax.xlane.f32.xlu0 %v1032
      %v1034 = vpop.xlane.xlu0 %1033
      %v1035 = vsel %vm974, %v956, -inf
      %1036 = vmax.xlane.f32.xlu0 %v1035
      %v1037 = vpop.xlane.xlu0 %1036
      %v1038 = vsel %vm974, %v961, -inf
      %1039 = vmax.xlane.f32.xlu0 %v1038
      %v1040 = vpop.xlane.xlu0 %1039
      %v1041 = vsel %vm974, %v966, -inf
      %1042 = vmax.xlane.f32.xlu0 %v1041
      %v1043 = vpop.xlane.xlu0 %1042
      %v1044 = vsel %vm974, %v971, -inf
      %1045 = vmax.xlane.f32.xlu0 %v1044
      %v1046 = vpop.xlane.xlu0 %1045
      %v1047 = vsub.f32 %v553, %v977
      %v1048 = vsub.f32 %v558, %v980
      %v1049 = vsub.f32 %v563, %v983
      %v1050 = vsub.f32 %v568, %v986
      %v1051 = vsub.f32 %v573, %v989
      %v1052 = vsub.f32 %v578, %v992
      %v1053 = vsub.f32 %v684, %v995
      %v1054 = vsub.f32 %v689, %v998
      %v1055 = vsub.f32 %v694, %v1001
      %v1056 = vsub.f32 %v699, %v1004
      %v1057 = vsub.f32 %v704, %v1007
      %v1058 = vsub.f32 %v709, %v1010
      %v1059 = vsub.f32 %v815, %v1013
      %v1060 = vsub.f32 %v820, %v1016
      %v1061 = vsub.f32 %v825, %v1019
      %v1062 = vsub.f32 %v830, %v1022
      %v1063 = vsub.f32 %v835, %v1025
      %v1064 = vsub.f32 %v840, %v1028
      %v1065 = vsub.f32 %v946, %v1031
      %v1066 = vsub.f32 %v951, %v1034
      %v1067 = vsub.f32 %v956, %v1037
      %v1068 = vsub.f32 %v961, %v1040
      %v1069 = vsub.f32 %v966, %v1043
      %v1070 = vsub.f32 %v971, %v1046
      %v1071 = vmul.f32 %v1047, 1.442695
      %v1072 = vpow.pop %v1071
      %v1073 = vmul.f32 %v1048, 1.442695
      %v1074 = vpow.pop %v1073
      %v1075 = vmul.f32 %v1049, 1.442695
      %v1076 = vpow.pop %v1075
      %v1077 = vmul.f32 %v1050, 1.442695
      %v1078 = vpow.pop %v1077
      %v1079 = vmul.f32 %v1051, 1.442695
      %v1080 = vpow.pop %v1079
      %v1081 = vmul.f32 %v1052, 1.442695
      %v1082 = vpow.pop %v1081
      %v1083 = vmul.f32 %v1053, 1.442695
      %v1084 = vpow.pop %v1083
      %v1085 = vmul.f32 %v1054, 1.442695
      %v1086 = vpow.pop %v1085
      %v1087 = vmul.f32 %v1055, 1.442695
      %v1088 = vpow.pop %v1087
      %v1089 = vmul.f32 %v1056, 1.442695
      %v1090 = vpow.pop %v1089
      %v1091 = vmul.f32 %v1057, 1.442695
      %v1092 = vpow.pop %v1091
      %v1093 = vmul.f32 %v1058, 1.442695
      %v1094 = vpow.pop %v1093
      %v1095 = vmul.f32 %v1059, 1.442695
      %v1096 = vpow.pop %v1095
      %v1097 = vmul.f32 %v1060, 1.442695
      %v1098 = vpow.pop %v1097
      %v1099 = vmul.f32 %v1061, 1.442695
      %v1100 = vpow.pop %v1099
      %v1101 = vmul.f32 %v1062, 1.442695
      %v1102 = vpow.pop %v1101
      %v1103 = vmul.f32 %v1063, 1.442695
      %v1104 = vpow.pop %v1103
      %v1105 = vmul.f32 %v1064, 1.442695
      %v1106 = vpow.pop %v1105
      %v1107 = vmul.f32 %v1065, 1.442695
      %v1108 = vpow.pop %v1107
      %v1109 = vmul.f32 %v1066, 1.442695
      %v1110 = vpow.pop %v1109
      %v1111 = vmul.f32 %v1067, 1.442695
      %v1112 = vpow.pop %v1111
      %v1113 = vmul.f32 %v1068, 1.442695
      %v1114 = vpow.pop %v1113
      %v1115 = vmul.f32 %v1069, 1.442695
      %v1116 = vpow.pop %v1115
      %v1117 = vmul.f32 %v1070, 1.442695
      %v1118 = vpow.pop %v1117
      %v1119 = vsel %vm974, %v1072, 0.0
      %1120 = vadd.xlane.f32.xlu0 %v1119
      %v1121 = vpop.xlane.xlu0 %1120
      %v1122 = vsel %vm974, %v1074, 0.0
      %1123 = vadd.xlane.f32.xlu0 %v1122
      %v1124 = vpop.xlane.xlu0 %1123
      %v1125 = vsel %vm974, %v1076, 0.0
      %1126 = vadd.xlane.f32.xlu0 %v1125
      %v1127 = vpop.xlane.xlu0 %1126
      %v1128 = vsel %vm974, %v1078, 0.0
      %1129 = vadd.xlane.f32.xlu0 %v1128
      %v1130 = vpop.xlane.xlu0 %1129
      %v1131 = vsel %vm974, %v1080, 0.0
      %1132 = vadd.xlane.f32.xlu0 %v1131
      %v1133 = vpop.xlane.xlu0 %1132
      %v1134 = vsel %vm974, %v1082, 0.0
      %1135 = vadd.xlane.f32.xlu0 %v1134
      %v1136 = vpop.xlane.xlu0 %1135
      %v1137 = vsel %vm974, %v1084, 0.0
      %1138 = vadd.xlane.f32.xlu0 %v1137
      %v1139 = vpop.xlane.xlu0 %1138
      %v1140 = vsel %vm974, %v1086, 0.0
      %1141 = vadd.xlane.f32.xlu0 %v1140
      %v1142 = vpop.xlane.xlu0 %1141
      %v1143 = vsel %vm974, %v1088, 0.0
      %1144 = vadd.xlane.f32.xlu0 %v1143
      %v1145 = vpop.xlane.xlu0 %1144
      %v1146 = vsel %vm974, %v1090, 0.0
      %1147 = vadd.xlane.f32.xlu0 %v1146
      %v1148 = vpop.xlane.xlu0 %1147
      %v1149 = vsel %vm974, %v1092, 0.0
      %1150 = vadd.xlane.f32.xlu0 %v1149
      %v1151 = vpop.xlane.xlu0 %1150
      %v1152 = vsel %vm974, %v1094, 0.0
      %1153 = vadd.xlane.f32.xlu0 %v1152
      %v1154 = vpop.xlane.xlu0 %1153
      %v1155 = vsel %vm974, %v1096, 0.0
      %1156 = vadd.xlane.f32.xlu0 %v1155
      %v1157 = vpop.xlane.xlu0 %1156
      %v1158 = vsel %vm974, %v1098, 0.0
      %1159 = vadd.xlane.f32.xlu0 %v1158
      %v1160 = vpop.xlane.xlu0 %1159
      %v1161 = vsel %vm974, %v1100, 0.0
      %1162 = vadd.xlane.f32.xlu0 %v1161
      %v1163 = vpop.xlane.xlu0 %1162
      %v1164 = vsel %vm974, %v1102, 0.0
      %1165 = vadd.xlane.f32.xlu0 %v1164
      %v1166 = vpop.xlane.xlu0 %1165
      %v1167 = vsel %vm974, %v1104, 0.0
      %1168 = vadd.xlane.f32.xlu0 %v1167
      %v1169 = vpop.xlane.xlu0 %1168
      %v1170 = vsel %vm974, %v1106, 0.0
      %1171 = vadd.xlane.f32.xlu0 %v1170
      %v1172 = vpop.xlane.xlu0 %1171
      %v1173 = vsel %vm974, %v1108, 0.0
      %1174 = vadd.xlane.f32.xlu0 %v1173
      %v1175 = vpop.xlane.xlu0 %1174
      %v1176 = vsel %vm974, %v1110, 0.0
      %1177 = vadd.xlane.f32.xlu0 %v1176
      %v1178 = vpop.xlane.xlu0 %1177
      %v1179 = vsel %vm974, %v1112, 0.0
      %1180 = vadd.xlane.f32.xlu0 %v1179
      %v1181 = vpop.xlane.xlu0 %1180
      %v1182 = vsel %vm974, %v1114, 0.0
      %1183 = vadd.xlane.f32.xlu0 %v1182
      %v1184 = vpop.xlane.xlu0 %1183
      %v1185 = vsel %vm974, %v1116, 0.0
      %1186 = vadd.xlane.f32.xlu0 %v1185
      %v1187 = vpop.xlane.xlu0 %1186
      %v1188 = vsel %vm974, %v1118, 0.0
      %1189 = vadd.xlane.f32.xlu0 %v1188
      %v1190 = vpop.xlane.xlu0 %1189
      %1191 = vrot.lane.b32.xlu0 %v355, 64
      %v1192 = vpop.permute.xlu0 %1191
      %1193 = vrot.lane.b32.xlu0 %v360, 64
      %v1194 = vpop.permute.xlu0 %1193
      %1195 = vrot.lane.b32.xlu0 %v365, 64
      %v1196 = vpop.permute.xlu0 %1195
      %1197 = vrot.lane.b32.xlu0 %v370, 64
      %v1198 = vpop.permute.xlu0 %1197
      %1199 = vrot.lane.b32.xlu0 %v375, 64
      %v1200 = vpop.permute.xlu0 %1199
      %1201 = vrot.lane.b32.xlu0 %v380, 64
      %v1202 = vpop.permute.xlu0 %1201
      %v1210 = vsel %vm974, %v1072, 0
      %v1213 = vsel %vm974, %v1074, 0
      %v1216 = vsel %vm974, %v1076, 0
      %v1219 = vsel %vm974, %v1078, 0
      %v1222 = vsel %vm974, %v1080, 0
      %v1225 = vsel %vm974, %v1082, 0
      %1227 = vmatprep.subr.mxu0 0.0
      %1228 = vmatpush1.msra.mxu0 %v1192
      %1229 = vmatprep.subr.mxu0 0.0
      %1230 = vmatpush1.msra.mxu0 %v1194
      %1231 = vmatprep.subr.mxu0 0.0
      %1232 = vmatpush1.msra.mxu0 %v1196
      %1233 = vmatprep.subr.mxu0 0.0
      %1234 = vmatpush1.msra.mxu0 %v1198
      %1235 = vmatprep.subr.mxu0 0.0
      %1236 = vmatpush1.msra.mxu0 %v1200
      %1237 = vmatprep.subr.mxu0 0.0
      %1238 = vmatpush1.msra.mxu0 %v1202
      %1239 = vmatprep.subr.mxu0 0.0
      %1240 = vmatpush1.msra.mxu0 0.0
      %1241 = vmatprep.subr.mxu0 0.0
      %1242 = vmatpush1.msra.mxu0 0.0
      %1243 = vmatprep.subr.mxu0 0.0
      %1244 = vmatpush1.msra.mxu0 0.0
      %1245 = vmatprep.subr.mxu0 0.0
      %1246 = vmatpush1.msra.mxu0 0.0
      %1247 = vmatprep.subr.mxu0 0.0
      %1248 = vmatpush1.msra.mxu0 0.0
      %1249 = vmatprep.subr.mxu0 0.0
      %1250 = vmatpush1.msra.mxu0 0.0
      %1251 = vmatprep.subr.mxu0 0.0
      %1252 = vmatpush1.msra.mxu0 0.0
      %1253 = vmatprep.subr.mxu0 0.0
      %1254 = vmatpush1.msra.mxu0 0.0
      %1255 = vmatprep.subr.mxu0 0.0
      %1256 = vmatpush1.msra.mxu0 0.0
      %1257 = vmatprep.subr.mxu0 0.0
      %1258 = vmatpush1.msra.mxu0 0.0
      %1259 = vmatprep.subr.mxu0 0.0
      %1260 = vmatpush1.msra.mxu0 0.0
      %1261 = vmatprep.subr.mxu0 0.0
      %1262 = vmatpush1.msra.mxu0 0.0
      %1263 = vmatprep.subr.mxu0 0.0
      %1264 = vmatpush1.msra.mxu0 0.0
      %1265 = vmatprep.subr.mxu0 0.0
      %1266 = vmatpush1.msra.mxu0 0.0
      %1267 = vmatprep.subr.mxu0 0.0
      %1268 = vmatpush1.msra.mxu0 0.0
      %1269 = vmatprep.subr.mxu0 0.0
      %1270 = vmatpush1.msra.mxu0 0.0
      %1271 = vmatprep.subr.mxu0 0.0
      %1272 = vmatpush1.msra.mxu0 0.0
      %1273 = vmatprep.subr.mxu0 0.0
      %1274 = vmatpush1.msra.mxu0 0.0
      %1275 = vmatprep.subr.mxu0 0.0
      %1276 = vmatpush1.msra.mxu0 0.0
      %1277 = vmatprep.subr.mxu0 0.0
      %1278 = vmatpush1.msra.mxu0 0.0
      %1279 = vmatprep.subr.mxu0 0.0
      %1280 = vmatpush1.msra.mxu0 0.0
      %1281 = vmatprep.subr.mxu0 0.0
      %1282 = vmatpush1.msra.mxu0 0.0
      %1283 = vmatprep.subr.mxu0 0.0
      %1284 = vmatpush1.msra.mxu0 0.0
      %1285 = vmatprep.subr.mxu0 0.0
      %1286 = vmatpush1.msra.mxu0 0.0
      %1287 = vmatprep.subr.mxu0 0.0
      %1288 = vmatpush1.msra.mxu0 0.0
      %1289 = vmatprep.subr.mxu0 0.0
      %1290 = vmatpush1.msra.mxu0 0.0
      %1291 = vmatprep.mubr.f32.mxu0 0.0
      %1292 = vmatmul.mubr.f32.gmra.mrb[0].mxu0 %v1210
      %v1293 = vpop.f32.mrb[0].mxu0
      %v1294 = vadd.f32 0.0, %v1293
      %v1295 = vpop.f32.mrb[0].mxu0
      %1296 = vmatprep.mubr.f32.mxu0 0.0
      %1297 = vmatmul.mubr.f32.gmra.mrb[0].mxu0 %v1213
      %v1298 = vpop.f32.mrb[0].mxu0
      %v1299 = vadd.f32 0.0, %v1298
      %v1300 = vpop.f32.mrb[0].mxu0
      %1301 = vmatprep.mubr.f32.mxu0 0.0
      %1302 = vmatmul.mubr.f32.gmra.mrb[0].mxu0 %v1216
      %v1303 = vpop.f32.mrb[0].mxu0
      %v1304 = vadd.f32 0.0, %v1303
      %v1305 = vpop.f32.mrb[0].mxu0
      %1306 = vmatprep.mubr.f32.mxu0 0.0
      %1307 = vmatmul.mubr.f32.gmra.mrb[0].mxu0 %v1219
      %v1308 = vpop.f32.mrb[0].mxu0
      %v1309 = vadd.f32 0.0, %v1308
      %v1310 = vpop.f32.mrb[0].mxu0
      %1311 = vmatprep.mubr.f32.mxu0 0.0
      %1312 = vmatmul.mubr.f32.gmra.mrb[0].mxu0 %v1222
      %v1313 = vpop.f32.mrb[0].mxu0
      %v1314 = vadd.f32 0.0, %v1313
      %v1315 = vpop.f32.mrb[0].mxu0
      %1316 = vmatprep.mubr.f32.mxu0 0.0
      %1317 = vmatmul.mubr.f32.gmra.mrb[0].mxu0 %v1225
      %v1318 = vpop.f32.mrb[0].mxu0
      %v1319 = vadd.f32 0.0, %v1318
      %v1320 = vpop.f32.mrb[0].mxu0
      %1321 = vdwg.mxu0
      %1322 = vrot.lane.b32.xlu0 %v385, 64
      %v1323 = vpop.permute.xlu0 %1322
      %1324 = vrot.lane.b32.xlu0 %v390, 64
      %v1325 = vpop.permute.xlu0 %1324
      %1326 = vrot.lane.b32.xlu0 %v395, 64
      %v1327 = vpop.permute.xlu0 %1326
      %1328 = vrot.lane.b32.xlu0 %v400, 64
      %v1329 = vpop.permute.xlu0 %1328
      %1330 = vrot.lane.b32.xlu0 %v405, 64
      %v1331 = vpop.permute.xlu0 %1330
      %1332 = vrot.lane.b32.xlu0 %v410, 64
      %v1333 = vpop.permute.xlu0 %1332
      %v1341 = vsel %vm974, %v1084, 0
      %v1344 = vsel %vm974, %v1086, 0
      %v1347 = vsel %vm974, %v1088, 0
      %v1350 = vsel %vm974, %v1090, 0
      %v1353 = vsel %vm974, %v1092, 0
      %v1356 = vsel %vm974, %v1094, 0
      %1358 = vmatprep.subr.mxu0 0.0
      %1359 = vmatpush1.msra.mxu0 %v1323
      %1360 = vmatprep.subr.mxu0 0.0
      %1361 = vmatpush1.msra.mxu0 %v1325
      %1362 = vmatprep.subr.mxu0 0.0
      %1363 = vmatpush1.msra.mxu0 %v1327
      %1364 = vmatprep.subr.mxu0 0.0
      %1365 = vmatpush1.msra.mxu0 %v1329
      %1366 = vmatprep.subr.mxu0 0.0
      %1367 = vmatpush1.msra.mxu0 %v1331
      %1368 = vmatprep.subr.mxu0 0.0
      %1369 = vmatpush1.msra.mxu0 %v1333
      %1370 = vmatprep.subr.mxu0 0.0
      %1371 = vmatpush1.msra.mxu0 0.0
      %1372 = vmatprep.subr.mxu0 0.0
      %1373 = vmatpush1.msra.mxu0 0.0
      %1374 = vmatprep.subr.mxu0 0.0
      %1375 = vmatpush1.msra.mxu0 0.0
      %1376 = vmatprep.subr.mxu0 0.0
      %1377 = vmatpush1.msra.mxu0 0.0
      %1378 = vmatprep.subr.mxu0 0.0
      %1379 = vmatpush1.msra.mxu0 0.0
      %1380 = vmatprep.subr.mxu0 0.0
      %1381 = vmatpush1.msra.mxu0 0.0
      %1382 = vmatprep.subr.mxu0 0.0
      %1383 = vmatpush1.msra.mxu0 0.0
      %1384 = vmatprep.subr.mxu0 0.0
      %1385 = vmatpush1.msra.mxu0 0.0
      %1386 = vmatprep.subr.mxu0 0.0
      %1387 = vmatpush1.msra.mxu0 0.0
      %1388 = vmatprep.subr.mxu0 0.0
      %1389 = vmatpush1.msra.mxu0 0.0
      %1390 = vmatprep.subr.mxu0 0.0
      %1391 = vmatpush1.msra.mxu0 0.0
      %1392 = vmatprep.subr.mxu0 0.0
      %1393 = vmatpush1.msra.mxu0 0.0
      %1394 = vmatprep.subr.mxu0 0.0
      %1395 = vmatpush1.msra.mxu0 0.0
      %1396 = vmatprep.subr.mxu0 0.0
      %1397 = vmatpush1.msra.mxu0 0.0
      %1398 = vmatprep.subr.mxu0 0.0
      %1399 = vmatpush1.msra.mxu0 0.0
      %1400 = vmatprep.subr.mxu0 0.0
      %1401 = vmatpush1.msra.mxu0 0.0
      %1402 = vmatprep.subr.mxu0 0.0
      %1403 = vmatpush1.msra.mxu0 0.0
      %1404 = vmatprep.subr.mxu0 0.0
      %1405 = vmatpush1.msra.mxu0 0.0
      %1406 = vmatprep.subr.mxu0 0.0
      %1407 = vmatpush1.msra.mxu0 0.0
      %1408 = vmatprep.subr.mxu0 0.0
      %1409 = vmatpush1.msra.mxu0 0.0
      %1410 = vmatprep.subr.mxu0 0.0
      %1411 = vmatpush1.msra.mxu0 0.0
      %1412 = vmatprep.subr.mxu0 0.0
      %1413 = vmatpush1.msra.mxu0 0.0
      %1414 = vmatprep.subr.mxu0 0.0
      %1415 = vmatpush1.msra.mxu0 0.0
      %1416 = vmatprep.subr.mxu0 0.0
      %1417 = vmatpush1.msra.mxu0 0.0
      %1418 = vmatprep.subr.mxu0 0.0
      %1419 = vmatpush1.msra.mxu0 0.0
      %1420 = vmatprep.subr.mxu0 0.0
      %1421 = vmatpush1.msra.mxu0 0.0
      %1422 = vmatprep.mubr.f32.mxu0 0.0
      %1423 = vmatmul.mubr.f32.gmra.mrb[0].mxu0 %v1341
      %v1424 = vpop.f32.mrb[0].mxu0
      %v1425 = vadd.f32 0.0, %v1424
      %v1426 = vpop.f32.mrb[0].mxu0
      %1427 = vmatprep.mubr.f32.mxu0 0.0
      %1428 = vmatmul.mubr.f32.gmra.mrb[0].mxu0 %v1344
      %v1429 = vpop.f32.mrb[0].mxu0
      %v1430 = vadd.f32 0.0, %v1429
      %v1431 = vpop.f32.mrb[0].mxu0
      %1432 = vmatprep.mubr.f32.mxu0 0.0
      %1433 = vmatmul.mubr.f32.gmra.mrb[0].mxu0 %v1347
      %v1434 = vpop.f32.mrb[0].mxu0
      %v1435 = vadd.f32 0.0, %v1434
      %v1436 = vpop.f32.mrb[0].mxu0
      %1437 = vmatprep.mubr.f32.mxu0 0.0
      %1438 = vmatmul.mubr.f32.gmra.mrb[0].mxu0 %v1350
      %v1439 = vpop.f32.mrb[0].mxu0
      %v1440 = vadd.f32 0.0, %v1439
      %v1441 = vpop.f32.mrb[0].mxu0
      %1442 = vmatprep.mubr.f32.mxu0 0.0
      %1443 = vmatmul.mubr.f32.gmra.mrb[0].mxu0 %v1353
      %v1444 = vpop.f32.mrb[0].mxu0
      %v1445 = vadd.f32 0.0, %v1444
      %v1446 = vpop.f32.mrb[0].mxu0
      %1447 = vmatprep.mubr.f32.mxu0 0.0
      %1448 = vmatmul.mubr.f32.gmra.mrb[0].mxu0 %v1356
      %v1449 = vpop.f32.mrb[0].mxu0
      %v1450 = vadd.f32 0.0, %v1449
      %v1451 = vpop.f32.mrb[0].mxu0
      %1452 = vdwg.mxu0
      %1453 = vrot.lane.b32.xlu0 %v426, 64
      %v1454 = vpop.permute.xlu0 %1453
      %1455 = vrot.lane.b32.xlu0 %v428, 64
      %v1456 = vpop.permute.xlu0 %1455
      %1457 = vrot.lane.b32.xlu0 %v430, 64
      %v1458 = vpop.permute.xlu0 %1457
      %1459 = vrot.lane.b32.xlu0 %v432, 64
      %v1460 = vpop.permute.xlu0 %1459
      %1461 = vrot.lane.b32.xlu0 %v434, 64
      %v1462 = vpop.permute.xlu0 %1461
      %1463 = vrot.lane.b32.xlu0 %v436, 64
      %v1464 = vpop.permute.xlu0 %1463
      %v1472 = vsel %vm974, %v1096, 0
      %v1475 = vsel %vm974, %v1098, 0
      %v1478 = vsel %vm974, %v1100, 0
      %v1481 = vsel %vm974, %v1102, 0
      %v1484 = vsel %vm974, %v1104, 0
      %v1487 = vsel %vm974, %v1106, 0
      %1489 = vmatprep.subr.mxu0 0.0
      %1490 = vmatpush1.msra.mxu0 %v1454
      %1491 = vmatprep.subr.mxu0 0.0
      %1492 = vmatpush1.msra.mxu0 %v1456
      %1493 = vmatprep.subr.mxu0 0.0
      %1494 = vmatpush1.msra.mxu0 %v1458
      %1495 = vmatprep.subr.mxu0 0.0
      %1496 = vmatpush1.msra.mxu0 %v1460
      %1497 = vmatprep.subr.mxu0 0.0
      %1498 = vmatpush1.msra.mxu0 %v1462
      %1499 = vmatprep.subr.mxu0 0.0
      %1500 = vmatpush1.msra.mxu0 %v1464
      %1501 = vmatprep.subr.mxu0 0.0
      %1502 = vmatpush1.msra.mxu0 0.0
      %1503 = vmatprep.subr.mxu0 0.0
      %1504 = vmatpush1.msra.mxu0 0.0
      %1505 = vmatprep.subr.mxu0 0.0
      %1506 = vmatpush1.msra.mxu0 0.0
      %1507 = vmatprep.subr.mxu0 0.0
      %1508 = vmatpush1.msra.mxu0 0.0
      %1509 = vmatprep.subr.mxu0 0.0
      %1510 = vmatpush1.msra.mxu0 0.0
      %1511 = vmatprep.subr.mxu0 0.0
      %1512 = vmatpush1.msra.mxu0 0.0
      %1513 = vmatprep.subr.mxu0 0.0
      %1514 = vmatpush1.msra.mxu0 0.0
      %1515 = vmatprep.subr.mxu0 0.0
      %1516 = vmatpush1.msra.mxu0 0.0
      %1517 = vmatprep.subr.mxu0 0.0
      %1518 = vmatpush1.msra.mxu0 0.0
      %1519 = vmatprep.subr.mxu0 0.0
      %1520 = vmatpush1.msra.mxu0 0.0
      %1521 = vmatprep.subr.mxu0 0.0
      %1522 = vmatpush1.msra.mxu0 0.0
      %1523 = vmatprep.subr.mxu0 0.0
      %1524 = vmatpush1.msra.mxu0 0.0
      %1525 = vmatprep.subr.mxu0 0.0
      %1526 = vmatpush1.msra.mxu0 0.0
      %1527 = vmatprep.subr.mxu0 0.0
      %1528 = vmatpush1.msra.mxu0 0.0
      %1529 = vmatprep.subr.mxu0 0.0
      %1530 = vmatpush1.msra.mxu0 0.0
      %1531 = vmatprep.subr.mxu0 0.0
      %1532 = vmatpush1.msra.mxu0 0.0
      %1533 = vmatprep.subr.mxu0 0.0
      %1534 = vmatpush1.msra.mxu0 0.0
      %1535 = vmatprep.subr.mxu0 0.0
      %1536 = vmatpush1.msra.mxu0 0.0
      %1537 = vmatprep.subr.mxu0 0.0
      %1538 = vmatpush1.msra.mxu0 0.0
      %1539 = vmatprep.subr.mxu0 0.0
      %1540 = vmatpush1.msra.mxu0 0.0
      %1541 = vmatprep.subr.mxu0 0.0
      %1542 = vmatpush1.msra.mxu0 0.0
      %1543 = vmatprep.subr.mxu0 0.0
      %1544 = vmatpush1.msra.mxu0 0.0
      %1545 = vmatprep.subr.mxu0 0.0
      %1546 = vmatpush1.msra.mxu0 0.0
      %1547 = vmatprep.subr.mxu0 0.0
      %1548 = vmatpush1.msra.mxu0 0.0
      %1549 = vmatprep.subr.mxu0 0.0
      %1550 = vmatpush1.msra.mxu0 0.0
      %1551 = vmatprep.subr.mxu0 0.0
      %1552 = vmatpush1.msra.mxu0 0.0
      %1553 = vmatprep.mubr.f32.mxu0 0.0
      %1554 = vmatmul.mubr.f32.gmra.mrb[0].mxu0 %v1472
      %v1555 = vpop.f32.mrb[0].mxu0
      %v1556 = vadd.f32 0.0, %v1555
      %v1557 = vpop.f32.mrb[0].mxu0
      %1558 = vmatprep.mubr.f32.mxu0 0.0
      %1559 = vmatmul.mubr.f32.gmra.mrb[0].mxu0 %v1475
      %v1560 = vpop.f32.mrb[0].mxu0
      %v1561 = vadd.f32 0.0, %v1560
      %v1562 = vpop.f32.mrb[0].mxu0
      %1563 = vmatprep.mubr.f32.mxu0 0.0
      %1564 = vmatmul.mubr.f32.gmra.mrb[0].mxu0 %v1478
      %v1565 = vpop.f32.mrb[0].mxu0
      %v1566 = vadd.f32 0.0, %v1565
      %v1567 = vpop.f32.mrb[0].mxu0
      %1568 = vmatprep.mubr.f32.mxu0 0.0
      %1569 = vmatmul.mubr.f32.gmra.mrb[0].mxu0 %v1481
      %v1570 = vpop.f32.mrb[0].mxu0
      %v1571 = vadd.f32 0.0, %v1570
      %v1572 = vpop.f32.mrb[0].mxu0
      %1573 = vmatprep.mubr.f32.mxu0 0.0
      %1574 = vmatmul.mubr.f32.gmra.mrb[0].mxu0 %v1484
      %v1575 = vpop.f32.mrb[0].mxu0
      %v1576 = vadd.f32 0.0, %v1575
      %v1577 = vpop.f32.mrb[0].mxu0
      %1578 = vmatprep.mubr.f32.mxu0 0.0
      %1579 = vmatmul.mubr.f32.gmra.mrb[0].mxu0 %v1487
      %v1580 = vpop.f32.mrb[0].mxu0
      %v1581 = vadd.f32 0.0, %v1580
      %v1582 = vpop.f32.mrb[0].mxu0
      %1583 = vdwg.mxu0
      %1584 = vrot.lane.b32.xlu0 %v438, 64
      %v1585 = vpop.permute.xlu0 %1584
      %1586 = vrot.lane.b32.xlu0 %v440, 64
      %v1587 = vpop.permute.xlu0 %1586
      %1588 = vrot.lane.b32.xlu0 %v442, 64
      %v1589 = vpop.permute.xlu0 %1588
      %1590 = vrot.lane.b32.xlu0 %v444, 64
      %v1591 = vpop.permute.xlu0 %1590
      %1592 = vrot.lane.b32.xlu0 %v446, 64
      %v1593 = vpop.permute.xlu0 %1592
      %1594 = vrot.lane.b32.xlu0 %v448, 64
      %v1595 = vpop.permute.xlu0 %1594
      %v1603 = vsel %vm974, %v1108, 0
      %v1606 = vsel %vm974, %v1110, 0
      %v1609 = vsel %vm974, %v1112, 0
      %v1612 = vsel %vm974, %v1114, 0
      %v1615 = vsel %vm974, %v1116, 0
      %v1618 = vsel %vm974, %v1118, 0
      %1620 = vmatprep.subr.mxu0 0.0
      %1621 = vmatpush1.msra.mxu0 %v1585
      %1622 = vmatprep.subr.mxu0 0.0
      %1623 = vmatpush1.msra.mxu0 %v1587
      %1624 = vmatprep.subr.mxu0 0.0
      %1625 = vmatpush1.msra.mxu0 %v1589
      %1626 = vmatprep.subr.mxu0 0.0
      %1627 = vmatpush1.msra.mxu0 %v1591
      %1628 = vmatprep.subr.mxu0 0.0
      %1629 = vmatpush1.msra.mxu0 %v1593
      %1630 = vmatprep.subr.mxu0 0.0
      %1631 = vmatpush1.msra.mxu0 %v1595
      %1632 = vmatprep.subr.mxu0 0.0
      %1633 = vmatpush1.msra.mxu0 0.0
      %1634 = vmatprep.subr.mxu0 0.0
      %1635 = vmatpush1.msra.mxu0 0.0
      %1636 = vmatprep.subr.mxu0 0.0
      %1637 = vmatpush1.msra.mxu0 0.0
      %1638 = vmatprep.subr.mxu0 0.0
      %1639 = vmatpush1.msra.mxu0 0.0
      %1640 = vmatprep.subr.mxu0 0.0
      %1641 = vmatpush1.msra.mxu0 0.0
      %1642 = vmatprep.subr.mxu0 0.0
      %1643 = vmatpush1.msra.mxu0 0.0
      %1644 = vmatprep.subr.mxu0 0.0
      %1645 = vmatpush1.msra.mxu0 0.0
      %1646 = vmatprep.subr.mxu0 0.0
      %1647 = vmatpush1.msra.mxu0 0.0
      %1648 = vmatprep.subr.mxu0 0.0
      %1649 = vmatpush1.msra.mxu0 0.0
      %1650 = vmatprep.subr.mxu0 0.0
      %1651 = vmatpush1.msra.mxu0 0.0
      %1652 = vmatprep.subr.mxu0 0.0
      %1653 = vmatpush1.msra.mxu0 0.0
      %1654 = vmatprep.subr.mxu0 0.0
      %1655 = vmatpush1.msra.mxu0 0.0
      %1656 = vmatprep.subr.mxu0 0.0
      %1657 = vmatpush1.msra.mxu0 0.0
      %1658 = vmatprep.subr.mxu0 0.0
      %1659 = vmatpush1.msra.mxu0 0.0
      %1660 = vmatprep.subr.mxu0 0.0
      %1661 = vmatpush1.msra.mxu0 0.0
      %1662 = vmatprep.subr.mxu0 0.0
      %1663 = vmatpush1.msra.mxu0 0.0
      %1664 = vmatprep.subr.mxu0 0.0
      %1665 = vmatpush1.msra.mxu0 0.0
      %1666 = vmatprep.subr.mxu0 0.0
      %1667 = vmatpush1.msra.mxu0 0.0
      %1668 = vmatprep.subr.mxu0 0.0
      %1669 = vmatpush1.msra.mxu0 0.0
      %1670 = vmatprep.subr.mxu0 0.0
      %1671 = vmatpush1.msra.mxu0 0.0
      %1672 = vmatprep.subr.mxu0 0.0
      %1673 = vmatpush1.msra.mxu0 0.0
      %1674 = vmatprep.subr.mxu0 0.0
      %1675 = vmatpush1.msra.mxu0 0.0
      %1676 = vmatprep.subr.mxu0 0.0
      %1677 = vmatpush1.msra.mxu0 0.0
      %1678 = vmatprep.subr.mxu0 0.0
      %1679 = vmatpush1.msra.mxu0 0.0
      %1680 = vmatprep.subr.mxu0 0.0
      %1681 = vmatpush1.msra.mxu0 0.0
      %1682 = vmatprep.subr.mxu0 0.0
      %1683 = vmatpush1.msra.mxu0 0.0
      %1684 = vmatprep.mubr.f32.mxu0 0.0
      %1685 = vmatmul.mubr.f32.gmra.mrb[0].mxu0 %v1603
      %v1686 = vpop.f32.mrb[0].mxu0
      %v1687 = vadd.f32 0.0, %v1686
      %v1688 = vpop.f32.mrb[0].mxu0
      %1689 = vmatprep.mubr.f32.mxu0 0.0
      %1690 = vmatmul.mubr.f32.gmra.mrb[0].mxu0 %v1606
      %v1691 = vpop.f32.mrb[0].mxu0
      %v1692 = vadd.f32 0.0, %v1691
      %v1693 = vpop.f32.mrb[0].mxu0
      %1694 = vmatprep.mubr.f32.mxu0 0.0
      %1695 = vmatmul.mubr.f32.gmra.mrb[0].mxu0 %v1609
      %v1696 = vpop.f32.mrb[0].mxu0
      %v1697 = vadd.f32 0.0, %v1696
      %v1698 = vpop.f32.mrb[0].mxu0
      %1699 = vmatprep.mubr.f32.mxu0 0.0
      %1700 = vmatmul.mubr.f32.gmra.mrb[0].mxu0 %v1612
      %v1701 = vpop.f32.mrb[0].mxu0
      %v1702 = vadd.f32 0.0, %v1701
      %v1703 = vpop.f32.mrb[0].mxu0
      %1704 = vmatprep.mubr.f32.mxu0 0.0
      %1705 = vmatmul.mubr.f32.gmra.mrb[0].mxu0 %v1615
      %v1706 = vpop.f32.mrb[0].mxu0
      %v1707 = vadd.f32 0.0, %v1706
      %v1708 = vpop.f32.mrb[0].mxu0
      %1709 = vmatprep.mubr.f32.mxu0 0.0
      %1710 = vmatmul.mubr.f32.gmra.mrb[0].mxu0 %v1618
      %v1711 = vpop.f32.mrb[0].mxu0
      %v1712 = vadd.f32 0.0, %v1711
      %v1713 = vpop.f32.mrb[0].mxu0
      %1714 = vdwg.mxu0
      %v1715 = vrcp.pop %v1121
      %v1716 = vrcp.pop %v1124
      %v1717 = vrcp.pop %v1127
      %v1718 = vrcp.pop %v1130
      %v1719 = vrcp.pop %v1133
      %v1720 = vrcp.pop %v1136
      %v1721 = vrcp.pop %v1139
      %v1722 = vrcp.pop %v1142
      %v1723 = vrcp.pop %v1145
      %v1724 = vrcp.pop %v1148
      %v1725 = vrcp.pop %v1151
      %v1726 = vrcp.pop %v1154
      %v1727 = vrcp.pop %v1157
      %v1728 = vrcp.pop %v1160
      %v1729 = vrcp.pop %v1163
      %v1730 = vrcp.pop %v1166
      %v1731 = vrcp.pop %v1169
      %v1732 = vrcp.pop %v1172
      %v1733 = vrcp.pop %v1175
      %v1734 = vrcp.pop %v1178
      %v1735 = vrcp.pop %v1181
      %v1736 = vrcp.pop %v1184
      %v1737 = vrcp.pop %v1187
      %v1738 = vrcp.pop %v1190
      %v1739 = vmul.f32 %v1294, %v1715
      %v1740 = vmul.f32 %v1299, %v1716
      %v1741 = vmul.f32 %v1304, %v1717
      %v1742 = vmul.f32 %v1309, %v1718
      %v1743 = vmul.f32 %v1314, %v1719
      %v1744 = vmul.f32 %v1319, %v1720
      %v1745 = vmul.f32 %v1425, %v1721
      %v1746 = vmul.f32 %v1430, %v1722
      %v1747 = vmul.f32 %v1435, %v1723
      %v1748 = vmul.f32 %v1440, %v1724
      %v1749 = vmul.f32 %v1445, %v1725
      %v1750 = vmul.f32 %v1450, %v1726
      %v1751 = vmul.f32 %v1556, %v1727
      %v1752 = vmul.f32 %v1561, %v1728
      %v1753 = vmul.f32 %v1566, %v1729
      %v1754 = vmul.f32 %v1571, %v1730
      %v1755 = vmul.f32 %v1576, %v1731
      %v1756 = vmul.f32 %v1581, %v1732
      %v1757 = vmul.f32 %v1687, %v1733
      %v1758 = vmul.f32 %v1692, %v1734
      %v1759 = vmul.f32 %v1697, %v1735
      %v1760 = vmul.f32 %v1702, %v1736
      %v1761 = vmul.f32 %v1707, %v1737
      %v1762 = vmul.f32 %v1712, %v1738
      %1775 = vrot.lane.b32.xlu0 %v1751, 16
      %v1776 = vpop.permute.xlu0 %1775
      %1777 = vrot.lane.b32.xlu0 %v1752, 16
      %v1778 = vpop.permute.xlu0 %1777
      %1779 = vrot.lane.b32.xlu0 %v1753, 16
      %v1780 = vpop.permute.xlu0 %1779
      %1781 = vrot.lane.b32.xlu0 %v1754, 16
      %v1782 = vpop.permute.xlu0 %1781
      %1783 = vrot.lane.b32.xlu0 %v1755, 16
      %v1784 = vpop.permute.xlu0 %1783
      %1785 = vrot.lane.b32.xlu0 %v1756, 16
      %v1786 = vpop.permute.xlu0 %1785
      %1787 = vrot.lane.b32.xlu0 %v1757, 16
      %v1788 = vpop.permute.xlu0 %1787
      %1789 = vrot.lane.b32.xlu0 %v1758, 16
      %v1790 = vpop.permute.xlu0 %1789
      %1791 = vrot.lane.b32.xlu0 %v1759, 16
      %v1792 = vpop.permute.xlu0 %1791
      %1793 = vrot.lane.b32.xlu0 %v1760, 16
      %v1794 = vpop.permute.xlu0 %1793
      %1795 = vrot.lane.b32.xlu0 %v1761, 16
      %v1796 = vpop.permute.xlu0 %1795
      %1797 = vrot.lane.b32.xlu0 %v1762, 16
      %v1798 = vpop.permute.xlu0 %1797
      %v1811 = vsel %vm461, %v1739, %v1776
      %v1812 = vsel %vm461, %v1740, %v1778
      %v1813 = vsel %vm461, %v1741, %v1780
      %v1814 = vsel %vm461, %v1742, %v1782
      %v1815 = vsel %vm461, %v1743, %v1784
      %v1816 = vsel %vm461, %v1744, %v1786
      %v1817 = vsel %vm461, %v1745, %v1788
      %v1818 = vsel %vm461, %v1746, %v1790
      %v1819 = vsel %vm461, %v1747, %v1792
      %v1820 = vsel %vm461, %v1748, %v1794
      %v1821 = vsel %vm461, %v1749, %v1796
      %v1822 = vsel %vm461, %v1750, %v1798
      %v1823 = vld [vmem:[%s3] sm:$0xff]
      %v1824 = vld [vmem:[%s3 + $0x8] sm:$0xff]
      %v1825 = vld [vmem:[%s3 + $0x10] sm:$0xff]
      %v1826 = vld [vmem:[%s3 + $0x18] sm:$0xff]
      %v1827 = vld [vmem:[%s4] sm:$0x1]
      %v1829 = vlaneseq
      %v1830 = vshrl.u32 %v1829, 7
      %v1831 = vsub.s32 0, %v1830
      %v1832 = vrot.slane %v1827, %v1831
      %v1835 = vsel %vm251, %v1811, 0
      %v1838 = vsel %vm251, %v1812, 0
      %v1841 = vsel %vm251, %v1813, 0
      %v1844 = vsel %vm251, %v1814, 0
      %v1847 = vsel %vm251, %v1815, 0
      %v1850 = vsel %vm251, %v1816, 0
      %v1853 = vsel %vm251, %v1817, 0
      %v1856 = vsel %vm251, %v1818, 0
      %v1859 = vsel %vm251, %v1819, 0
      %v1862 = vsel %vm251, %v1820, 0
      %v1865 = vsel %vm251, %v1821, 0
      %v1868 = vsel %vm251, %v1822, 0
      %1870 = vmatprep.subr.mxu0 0.0
      %1871 = vmatpush1.msra.mxu0 %v1823
      %1872 = vmatprep.subr.mxu0 0.0
      %1873 = vmatpush1.msra.mxu0 %v1824
      %1874 = vmatprep.subr.mxu0 0.0
      %1875 = vmatpush1.msra.mxu0 %v1825
      %1876 = vmatprep.subr.mxu0 0.0
      %1877 = vmatpush1.msra.mxu0 %v1826
      %1878 = vmatprep.subr.mxu0 0.0
      %1879 = vmatpush1.msra.mxu0 0.0
      %1880 = vmatprep.subr.mxu0 0.0
      %1881 = vmatpush1.msra.mxu0 0.0
      %1882 = vmatprep.subr.mxu0 0.0
      %1883 = vmatpush1.msra.mxu0 0.0
      %1884 = vmatprep.subr.mxu0 0.0
      %1885 = vmatpush1.msra.mxu0 0.0
      %1886 = vmatprep.subr.mxu0 0.0
      %1887 = vmatpush1.msra.mxu0 0.0
      %1888 = vmatprep.subr.mxu0 0.0
      %1889 = vmatpush1.msra.mxu0 0.0
      %1890 = vmatprep.subr.mxu0 0.0
      %1891 = vmatpush1.msra.mxu0 0.0
      %1892 = vmatprep.subr.mxu0 0.0
      %1893 = vmatpush1.msra.mxu0 0.0
      %1894 = vmatprep.subr.mxu0 0.0
      %1895 = vmatpush1.msra.mxu0 0.0
      %1896 = vmatprep.subr.mxu0 0.0
      %1897 = vmatpush1.msra.mxu0 0.0
      %1898 = vmatprep.subr.mxu0 0.0
      %1899 = vmatpush1.msra.mxu0 0.0
      %1900 = vmatprep.subr.mxu0 0.0
      %1901 = vmatpush1.msra.mxu0 0.0
      %1902 = vmatprep.subr.mxu0 0.0
      %1903 = vmatpush1.msra.mxu0 0.0
      %1904 = vmatprep.subr.mxu0 0.0
      %1905 = vmatpush1.msra.mxu0 0.0
      %1906 = vmatprep.subr.mxu0 0.0
      %1907 = vmatpush1.msra.mxu0 0.0
      %1908 = vmatprep.subr.mxu0 0.0
      %1909 = vmatpush1.msra.mxu0 0.0
      %1910 = vmatprep.subr.mxu0 0.0
      %1911 = vmatpush1.msra.mxu0 0.0
      %1912 = vmatprep.subr.mxu0 0.0
      %1913 = vmatpush1.msra.mxu0 0.0
      %1914 = vmatprep.subr.mxu0 0.0
      %1915 = vmatpush1.msra.mxu0 0.0
      %1916 = vmatprep.subr.mxu0 0.0
      %1917 = vmatpush1.msra.mxu0 0.0
      %1918 = vmatprep.subr.mxu0 0.0
      %1919 = vmatpush1.msra.mxu0 0.0
      %1920 = vmatprep.subr.mxu0 0.0
      %1921 = vmatpush1.msra.mxu0 0.0
      %1922 = vmatprep.subr.mxu0 0.0
      %1923 = vmatpush1.msra.mxu0 0.0
      %1924 = vmatprep.subr.mxu0 0.0
      %1925 = vmatpush1.msra.mxu0 0.0
      %1926 = vmatprep.subr.mxu0 0.0
      %1927 = vmatpush1.msra.mxu0 0.0
      %1928 = vmatprep.subr.mxu0 0.0
      %1929 = vmatpush1.msra.mxu0 0.0
      %1930 = vmatprep.subr.mxu0 0.0
      %1931 = vmatpush1.msra.mxu0 0.0
      %1932 = vmatprep.subr.mxu0 0.0
      %1933 = vmatpush1.msra.mxu0 0.0
      %1934 = vmatprep.mubr.f32.mxu0 0.0
      %1935 = vmatmul.mubr.f32.gmra.mrb[0].mxu0 %v1835
      %v1936 = vpop.f32.mrb[0].mxu0
      %v1937 = vadd.f32 %v1832, %v1936
      %v1938 = vpop.f32.mrb[0].mxu0
      %1939 = vmatprep.mubr.f32.mxu0 0.0
      %1940 = vmatmul.mubr.f32.gmra.mrb[0].mxu0 %v1838
      %v1941 = vpop.f32.mrb[0].mxu0
      %v1942 = vadd.f32 %v1832, %v1941
      %v1943 = vpop.f32.mrb[0].mxu0
      %1944 = vmatprep.mubr.f32.mxu0 0.0
      %1945 = vmatmul.mubr.f32.gmra.mrb[0].mxu0 %v1841
      %v1946 = vpop.f32.mrb[0].mxu0
      %v1947 = vadd.f32 %v1832, %v1946
      %v1948 = vpop.f32.mrb[0].mxu0
      %1949 = vmatprep.mubr.f32.mxu0 0.0
      %1950 = vmatmul.mubr.f32.gmra.mrb[0].mxu0 %v1844
      %v1951 = vpop.f32.mrb[0].mxu0
      %v1952 = vadd.f32 %v1832, %v1951
      %v1953 = vpop.f32.mrb[0].mxu0
      %1954 = vmatprep.mubr.f32.mxu0 0.0
      %1955 = vmatmul.mubr.f32.gmra.mrb[0].mxu0 %v1847
      %v1956 = vpop.f32.mrb[0].mxu0
      %v1957 = vadd.f32 %v1832, %v1956
      %v1958 = vpop.f32.mrb[0].mxu0
      %1959 = vmatprep.mubr.f32.mxu0 0.0
      %1960 = vmatmul.mubr.f32.gmra.mrb[0].mxu0 %v1850
      %v1961 = vpop.f32.mrb[0].mxu0
      %v1962 = vadd.f32 %v1832, %v1961
      %v1963 = vpop.f32.mrb[0].mxu0
      %1964 = vmatprep.mubr.f32.mxu0 0.0
      %1965 = vmatmul.mubr.f32.gmra.mrb[0].mxu0 %v1853
      %v1966 = vpop.f32.mrb[0].mxu0
      %v1967 = vadd.f32 %v1832, %v1966
      %v1968 = vpop.f32.mrb[0].mxu0
      %1969 = vmatprep.mubr.f32.mxu0 0.0
      %1970 = vmatmul.mubr.f32.gmra.mrb[0].mxu0 %v1856
      %v1971 = vpop.f32.mrb[0].mxu0
      %v1972 = vadd.f32 %v1832, %v1971
      %v1973 = vpop.f32.mrb[0].mxu0
      %1974 = vmatprep.mubr.f32.mxu0 0.0
      %1975 = vmatmul.mubr.f32.gmra.mrb[0].mxu0 %v1859
      %v1976 = vpop.f32.mrb[0].mxu0
      %v1977 = vadd.f32 %v1832, %v1976
      %v1978 = vpop.f32.mrb[0].mxu0
      %1979 = vmatprep.mubr.f32.mxu0 0.0
      %1980 = vmatmul.mubr.f32.gmra.mrb[0].mxu0 %v1862
      %v1981 = vpop.f32.mrb[0].mxu0
      %v1982 = vadd.f32 %v1832, %v1981
      %v1983 = vpop.f32.mrb[0].mxu0
      %1984 = vmatprep.mubr.f32.mxu0 0.0
      %1985 = vmatmul.mubr.f32.gmra.mrb[0].mxu0 %v1865
      %v1986 = vpop.f32.mrb[0].mxu0
      %v1987 = vadd.f32 %v1832, %v1986
      %v1988 = vpop.f32.mrb[0].mxu0
      %1989 = vmatprep.mubr.f32.mxu0 0.0
      %1990 = vmatmul.mubr.f32.gmra.mrb[0].mxu0 %v1868
      %v1991 = vpop.f32.mrb[0].mxu0
      %v1992 = vadd.f32 %v1832, %v1991
      %v1993 = vpop.f32.mrb[0].mxu0
      %1994 = vdwg.mxu0
      %1995 = vst.msk [vmem:[%s226] sm:$0xff] %vm251, %v1937
      %1996 = vst.msk [vmem:[%s226 + $0x8] sm:$0xff] %vm251, %v1942
      %1997 = vst.msk [vmem:[%s226 + $0x10] sm:$0xff] %vm251, %v1947
      %1998 = vst.msk [vmem:[%s226 + $0x18] sm:$0xff] %vm251, %v1952
      %1999 = vst.msk [vmem:[%s226 + $0x20] sm:$0xff] %vm251, %v1957
      %2000 = vst.msk [vmem:[%s226 + $0x28] sm:$0xff] %vm251, %v1962
      %2001 = vst.msk [vmem:[%s226 + $0x30] sm:$0xff] %vm251, %v1967
      %2002 = vst.msk [vmem:[%s226 + $0x38] sm:$0xff] %vm251, %v1972
      %2003 = vst.msk [vmem:[%s226 + $0x40] sm:$0xff] %vm251, %v1977
      %2004 = vst.msk [vmem:[%s226 + $0x48] sm:$0xff] %vm251, %v1982
      %2005 = vst.msk [vmem:[%s226 + $0x50] sm:$0xff] %vm251, %v1987
      %2006 = vst.msk [vmem:[%s226 + $0x58] sm:$0xff] %vm251, %v1992
      %s2007 = smul.u32 12, %s16
      %p2008 = scmp.lt.s32.totalorder %s2007, 35
      %s2009 = scalar_select %p2008, %s2007, 35
      %s2010 = smul.addr %s2009, 8
      %s2011 = scalar_lea.vmem %s5, %s2010
      // Predicated region
      $region41: #{tpu_custom_call.1} parent=39 // pred_check
        %p2012 = pneg %p144
      $region42: #{tpu_custom_call.1} parent=39 // pred_check_branch
        %2014 = sbr.rel (%p2012) target = $region44
      $region43: #{tpu_custom_call.1} parent=39 // pred_region
        %s2015 = smul.u32 12, %s16
      $region44: #{tpu_custom_call.1} parent=39 // pred_fallthru
        _
    $region40: #{tpu_custom_call.1} parent=5 // pred_fallthru
      _
    %p2016 = scmp.le.s32.totalorder 2, %s11
    // Predicated region
    $region45: #{tpu_custom_call.1} parent=5 // pred_check
      %p2017 = pneg %p2016
    $region46: #{tpu_custom_call.1} parent=5 // pred_check_branch
      %2019 = sbr.rel (%p2017) target = $region48
    $region47: #{tpu_custom_call.1} parent=5 // pred_region
      %s2020 = ssub.s32 %s11, 2
      // Predicated region
      $region49: #{tpu_custom_call.1} parent=47 // pred_check
        %p2021 = pneg %p150
      $region50: #{tpu_custom_call.1} parent=47 // pred_check_branch
        %2023 = sbr.rel (%p2021) target = $region52
      $region51: #{tpu_custom_call.1} parent=47 // pred_region
        %s2024 = smul.u32 12, %s17
        %p2025 = scmp.lt.s32.totalorder %s2024, 35
        %s2026 = scalar_select %p2025, %s2024, 35
        %s2027 = smul.addr %s2026, 8
        %s2028 = scalar_lea.vmem %s5, %s2027
      $region52: #{tpu_custom_call.1} parent=47 // pred_fallthru
        _
    $region48: #{tpu_custom_call.1} parent=5 // pred_fallthru
      _
  $region6: #{tpu_custom_call.1} parent=0 // loop_footer
    %s15 = sadd.s32 1, %s11
  $region7: #{tpu_custom_call.1} parent=0 // loop_footer_branch
    %10 = sbr.rel target = $region3
  $region8: #{tpu_custom_call.1} parent=0 // loop_exit
    _

</llo_original>
